<compile_context>
chip_gen: v6e
topology: v6e:2x2x1
jax: 0.10.0
libtpu: 0.0.40
codegen_flags: <defaults>
</compile_context>

<pallas_src>
import jax
import jax.numpy as jnp
from jax.experimental import pallas as pl
from jax.experimental.pallas import tpu as pltpu


def _mul_conv1x1_kernel(w_ref, x_ref, s_ref, o_ref):
    """out = (W * s) @ x  ==  W @ (x * s)   (1x1 conv of SE-scaled activations).

    w_ref: (Co_blk, C_in)  bf16 weight tile (lane dim = C_in)
    x_ref: (C_in,  M)      f32 activations, channel-major (M = H*W)
    s_ref: (1,     C_in)   f32 per-input-channel SE scale (lane-major)
    o_ref: (Co_blk, M)     f32 output tile
    """
    # Scale the weight tile: lane-broadcast multiply (C_in is the lane dim of both
    # operands); bf16*f32 promotes to f32, then pack back to bf16 for the MXU.
    ws = (w_ref[...] * s_ref[...]).astype(jnp.bfloat16)
    # Both MXU operands bf16, f32 accumulation.
    o_ref[...] = jnp.dot(
        ws, x_ref[...].astype(jnp.bfloat16),
        preferred_element_type=jnp.float32,
    ).astype(o_ref.dtype)


def mul_conv1x1(x_nchw, scale_nc11, weight_oihw, *, cout_split=2):
    """out = Conv2d_1x1(x * scale).

    x: (1, C_in, H, W) f32, scale: (1, C_in, 1, 1) f32, weight: (C_out, C_in, 1, 1).
    Pass the weight already cast to bf16 (do the cast once at model init); if an f32
    weight is passed it is cast here (costs an extra per-call XLA op).
    """
    N, C_in, H, W = x_nchw.shape
    C_out = weight_oihw.shape[0]
    assert N == 1, "kernel assumes batch=1 (matches the reference module)"
    M = H * W

    # All reshapes below are contiguous (free) — no NCHW<->NHWC transposes.
    x_cm = x_nchw.reshape(C_in, M)
    s_1c = scale_nc11.reshape(1, C_in)
    w_oc = weight_oihw.reshape(C_out, C_in)
    if w_oc.dtype != jnp.bfloat16:
        w_oc = w_oc.astype(jnp.bfloat16)   # prefer casting at init, not per call

    if cout_split == 1:
        # Single VMEM-resident block, no grid (fallback / debug path).
        out_cm = pl.pallas_call(
            _mul_conv1x1_kernel,
            out_shape=jax.ShapeDtypeStruct((C_out, M), x_nchw.dtype),
            in_specs=[
                pl.BlockSpec(memory_space=pltpu.MemorySpace.VMEM),
                pl.BlockSpec(memory_space=pltpu.MemorySpace.VMEM),
                pl.BlockSpec(memory_space=pltpu.MemorySpace.VMEM),
            ],
            out_specs=pl.BlockSpec(memory_space=pltpu.MemorySpace.VMEM),
        )(w_oc, x_cm, s_1c)
        return out_cm.reshape(N, C_out, H, W)

    # --- C_out split (default, cout_split=2 on every generation) ---
    # v7x: "parallel" axis -> each TensorCore streams half the weight.
    # v5e/v6e (1 TC): the 2-step grid pipelines weight DMA against the matmul.
    co_blk = -(-C_out // cout_split)          # ceil
    co_blk = -(-co_blk // 8) * 8              # sublane-align each block to 8
    co_pad = co_blk * cout_split
    if co_pad != C_out:
        w_oc = jnp.pad(w_oc, ((0, co_pad - C_out), (0, 0)))

    out_cm = pl.pallas_call(
        _mul_conv1x1_kernel,
        out_shape=jax.ShapeDtypeStruct((co_pad, M), x_nchw.dtype),
        grid=(cout_split,),
        in_specs=[
            pl.BlockSpec((co_blk, C_in), lambda i: (i, 0)),   # weight tile per step
            pl.BlockSpec((C_in, M), lambda i: (0, 0)),        # activations: constant block
            pl.BlockSpec((1, C_in), lambda i: (0, 0)),        # scale: constant block
        ],
        out_specs=pl.BlockSpec((co_blk, M), lambda i: (i, 0)),
        compiler_params=pltpu.CompilerParams(
            dimension_semantics=("parallel",),
        ),
    )(w_oc, x_cm, s_1c)
    return out_cm[:C_out].reshape(N, C_out, H, W)


if __name__ == "__main__":
    key = jax.random.PRNGKey(0)
    k1, k2, k3 = jax.random.split(key, 3)

    # Shapes from the reference module (already small: ~3.3 MB total).
    N, C_in, H, W = 1, 2064, 7, 7
    C_out = 344

    x567 = jax.random.normal(k1, (N, C_in, H, W), dtype=jnp.float32)
    x572 = jax.random.normal(k2, (N, C_in, 1, 1), dtype=jnp.float32)
    # deterministic synthetic conv weight (Conv2d(2064, 344, 1, 1, bias=False))
    weight = jax.random.normal(k3, (C_out, C_in, 1, 1), dtype=jnp.float32) * 0.02

    # One-time (init-time) bf16 cast of the conv weight — per-call path sees bf16.
    weight_bf16 = weight.astype(jnp.bfloat16)

    # pure-JAX f32 reference of the same semantics
    ref = jax.lax.conv_general_dilated(
        x567 * x572, weight, window_strides=(1, 1), padding="VALID",
        dimension_numbers=("NCHW", "OIHW", "NCHW"),
    )

    # default path: 2-way C_out split (dual-TC sharding on v7x, DMA/compute pipelining
    # on v5e/v6e), bf16 MXU operands with f32 accumulation.
    out = jax.block_until_ready(mul_conv1x1(x567, x572, weight_bf16))
    assert out.shape == (N, C_out, H, W), out.shape
    assert jnp.allclose(out, ref, atol=5e-2, rtol=5e-2)   # loosened for bf16 operands

    # gridless fallback path, same kernel
    out1 = jax.block_until_ready(mul_conv1x1(x567, x572, weight_bf16, cout_split=1))
    assert out1.shape == (N, C_out, H, W), out1.shape
    assert jnp.allclose(out1, ref, atol=5e-2, rtol=5e-2)

    print("KERNEL_OK")
</pallas_src>

<mosaic_0001>
module attributes {stable_mosaic.version = 11 : i64} {
  func.func @_mul_conv1x1_kernel(%arg0: i32, %arg1: memref<176x2064xbf16, #tpu.memory_space<vmem>>, %arg2: memref<2064x49xf32, #tpu.memory_space<vmem>>, %arg3: memref<1x2064xf32, #tpu.memory_space<vmem>>, %arg4: memref<176x49xf32, #tpu.memory_space<vmem>>) attributes {dimension_semantics = [#tpu.dimension_semantics<parallel>], iteration_bounds = array<i64: 2>, scalar_prefetch = 0 : i64, scratch_operands = 0 : i64, tpu.core_type = #tpu.core_type<tc>, window_params = [{transform_indices = @transform_0, window_bounds = array<i64: 176, 2064>}, {pipeline_mode = #tpu.pipeline_mode<synchronous>, transform_indices = @transform_1, window_bounds = array<i64: 2064, 49>}, {pipeline_mode = #tpu.pipeline_mode<synchronous>, transform_indices = @transform_2, window_bounds = array<i64: 1, 2064>}, {transform_indices = @transform_3, window_bounds = array<i64: 176, 49>}]} {
    %c0 = arith.constant 0 : index
    %c0_0 = arith.constant 0 : index
    %0 = vector.load %arg1[%c0, %c0_0] : memref<176x2064xbf16, #tpu.memory_space<vmem>>, vector<176x2064xbf16>
    %c0_1 = arith.constant 0 : index
    %c0_2 = arith.constant 0 : index
    %1 = vector.load %arg3[%c0_1, %c0_2] : memref<1x2064xf32, #tpu.memory_space<vmem>>, vector<1x2064xf32>
    %2 = arith.extf %0 : vector<176x2064xbf16> to vector<176x2064xf32>
    %3 = vector.broadcast %1 : vector<1x2064xf32> to vector<176x2064xf32>
    %4 = arith.mulf %2, %3 : vector<176x2064xf32>
    %5 = arith.truncf %4 : vector<176x2064xf32> to vector<176x2064xbf16>
    %c0_3 = arith.constant 0 : index
    %c0_4 = arith.constant 0 : index
    %6 = vector.load %arg2[%c0_3, %c0_4] : memref<2064x49xf32, #tpu.memory_space<vmem>>, vector<2064x49xf32>
    %7 = arith.truncf %6 : vector<2064x49xf32> to vector<2064x49xbf16>
    %cst = arith.constant dense<0.000000e+00> : vector<176x49xf32>
    %8 = tpu.matmul %5, %7, %cst {dimension_numbers = #tpu.dot_dimension_numbers<[1], [0], [0], [1], [0, 0, 1, 1], [], []>} : vector<176x2064xbf16>, vector<2064x49xbf16>, vector<176x49xf32> -> vector<176x49xf32>
    %c0_5 = arith.constant 0 : index
    %c0_6 = arith.constant 0 : index
    %9 = vector.load %arg4[%c0_5, %c0_6] : memref<176x49xf32, #tpu.memory_space<vmem>>, vector<176x49xf32>
    tpu.vector_store %arg4[%c0_5, %c0_6], %8 {strides = array<i32>} : memref<176x49xf32, #tpu.memory_space<vmem>>, vector<176x49xf32>,
    return
  }
  func.func @transform_0(%arg0: i32) -> (i32, i32) {
    %c0_i32 = arith.constant 0 : i32
    %c0_i32_0 = arith.constant 0 : i32
    return %arg0, %c0_i32 : i32, i32
  }
  func.func @transform_1(%arg0: i32) -> (i32, i32) {
    %c0_i32 = arith.constant 0 : i32
    %c0_i32_0 = arith.constant 0 : i32
    %c0_i32_1 = arith.constant 0 : i32
    return %c0_i32, %c0_i32_0 : i32, i32
  }
  func.func @transform_2(%arg0: i32) -> (i32, i32) {
    %c0_i32 = arith.constant 0 : i32
    %c0_i32_0 = arith.constant 0 : i32
    %c0_i32_1 = arith.constant 0 : i32
    return %c0_i32, %c0_i32_0 : i32, i32
  }
  func.func @transform_3(%arg0: i32) -> (i32, i32) {
    %c0_i32 = arith.constant 0 : i32
    %c0_i32_0 = arith.constant 0 : i32
    return %arg0, %c0_i32 : i32, i32
  }
}

</mosaic_0001>

<llo_original>
// kernel: tpu_custom_call.1
$region0: #{tpu_custom_call.1}
  #allocation0 [shape = 'u32[]', space=smem, size = 0x4, offset = 0x4, fixed_abs, tag = 'smem constant byte address 0x4 - core index']
  #allocation1 [shape = 'u32[144,128]{1,0:T(1,128)}', space=vmem, size = 0x12000, scoped, tag = 'internal scratch']
  %s0 = inlined_call_operand.vmem [shape: bf16[352,2064], index: 0, kind: input, shape index: {}]
  %s1 = inlined_call_operand.vmem [shape: f32[2064,49], index: 1, kind: input, shape index: {}]
  %s2 = inlined_call_operand.vmem [shape: f32[1,2064], index: 2, kind: input, shape index: {}]
  %s3 = inlined_call_operand.vmem [shape: f32[352,49], index: 3, kind: output, shape index: {}]
  %s4 = sld [smem:[#allocation0]]
  $region45: #{tpu_custom_call.1} parent=0
    _
  %s6 = ssub.s32 1, %s4
  %s7 = scalar_select 0, %s6, %s4
  loop: start=0, step=1, limit=4
  $region2: #{tpu_custom_call.1} parent=0 // loop_pre_header
    _
  $region3: #{tpu_custom_call.1} parent=0 // loop_header
    %s9 = sphi 0, %s13
    %p10 = scmp.ge.s32.totalorder %s9, 4
    %s19 = sphi 0, %s21
    %s22 = sphi 0, %s19
    %s23 = sphi 0, %s22
    %s39 = sphi 0, %s23
    %s43 = sphi 0, %s43
    %s45 = sphi 0, %s43
    %s46 = sphi 0, %s45
    %s60 = sphi 0, %s46
    %s64 = sphi 0, %s64
    %s66 = sphi 0, %s64
    %s67 = sphi 0, %s66
    %s81 = sphi 0, %s67
    %s87 = sphi 0, %s89
    %s90 = sphi 0, %s87
    %s91 = sphi 0, %s90
    %s107 = sphi 0, %s91
  $region4: #{tpu_custom_call.1} parent=0 // loop_header_branch
    %12 = sbr.rel (%p10) target = $region8
  $region5: #{tpu_custom_call.1} parent=0 // loop_body
    %s14 = ssub.s32 %s9, 1
    %s15 = ssub.s32 %s9, 2
    %s16 = sadd.s32 %s9, 1
    %s17 = ssub.s32 %s9, %s16
    %p18 = scmp.eq.s32.totalorder %s17, 0
    %s20 = sadd.s32 %s19, 1
    %s21 = scalar_select %p18, %s19, %s20
    %p24 = pneg %p18
    %p25 = scmp.eq.s32.totalorder %s9, 1
    %p26 = por %p24, %p25
    %p27 = scmp.ne.s32.totalorder %s19, %s22
    %p28 = scmp.eq.s32.totalorder %s9, 0
    %p29 = por %p27, %p28
    %p30 = scmp.ne.s32.totalorder %s19, %s22
    %p31 = scmp.eq.s32.totalorder %s14, 1
    %p32 = por %p30, %p31
    %p33 = scmp.ne.s32.totalorder %s22, %s23
    %p34 = scmp.eq.s32.totalorder %s14, 0
    %p35 = por %p33, %p34
    %p36 = scmp.ne.s32.totalorder %s22, %s23
    %p37 = scmp.eq.s32.totalorder %s15, 1
    %p38 = por %p36, %p37
    %p40 = scmp.ne.s32.totalorder %s23, %s39
    %p41 = scmp.eq.s32.totalorder %s15, 0
    %p42 = por %p40, %p41
    %s44 = sadd.s32 %s43, 1
    %p47 = scmp.eq.s32.totalorder %s9, 1
    %p48 = scmp.ne.s32.totalorder %s43, %s45
    %p49 = scmp.eq.s32.totalorder %s9, 0
    %p50 = por %p48, %p49
    %p51 = scmp.ne.s32.totalorder %s43, %s45
    %p52 = scmp.eq.s32.totalorder %s14, 1
    %p53 = por %p51, %p52
    %p54 = scmp.ne.s32.totalorder %s45, %s46
    %p55 = scmp.eq.s32.totalorder %s14, 0
    %p56 = por %p54, %p55
    %p57 = scmp.ne.s32.totalorder %s45, %s46
    %p58 = scmp.eq.s32.totalorder %s15, 1
    %p59 = por %p57, %p58
    %p61 = scmp.ne.s32.totalorder %s46, %s60
    %p62 = scmp.eq.s32.totalorder %s15, 0
    %p63 = por %p61, %p62
    %s65 = sadd.s32 %s64, 1
    %p68 = scmp.eq.s32.totalorder %s9, 1
    %p69 = scmp.ne.s32.totalorder %s64, %s66
    %p70 = scmp.eq.s32.totalorder %s9, 0
    %p71 = por %p69, %p70
    %p72 = scmp.ne.s32.totalorder %s64, %s66
    %p73 = scmp.eq.s32.totalorder %s14, 1
    %p74 = por %p72, %p73
    %p75 = scmp.ne.s32.totalorder %s66, %s67
    %p76 = scmp.eq.s32.totalorder %s14, 0
    %p77 = por %p75, %p76
    %p78 = scmp.ne.s32.totalorder %s66, %s67
    %p79 = scmp.eq.s32.totalorder %s15, 1
    %p80 = por %p78, %p79
    %p82 = scmp.ne.s32.totalorder %s67, %s81
    %p83 = scmp.eq.s32.totalorder %s15, 0
    %p84 = por %p82, %p83
    %s85 = ssub.s32 %s9, %s16
    %p86 = scmp.eq.s32.totalorder %s85, 0
    %s88 = sadd.s32 %s87, 1
    %s89 = scalar_select %p86, %s87, %s88
    %p92 = pneg %p86
    %p93 = scmp.eq.s32.totalorder %s9, 1
    %p94 = por %p92, %p93
    %p95 = scmp.ne.s32.totalorder %s87, %s90
    %p96 = scmp.eq.s32.totalorder %s9, 0
    %p97 = por %p95, %p96
    %p98 = scmp.ne.s32.totalorder %s87, %s90
    %p99 = scmp.eq.s32.totalorder %s14, 1
    %p100 = por %p98, %p99
    %p101 = scmp.ne.s32.totalorder %s90, %s91
    %p102 = scmp.eq.s32.totalorder %s14, 0
    %p103 = por %p101, %p102
    %p104 = scmp.ne.s32.totalorder %s90, %s91
    %p105 = scmp.eq.s32.totalorder %s15, 1
    %p106 = por %p104, %p105
    %p108 = scmp.ne.s32.totalorder %s91, %s107
    %p109 = scmp.eq.s32.totalorder %s15, 0
    %p110 = por %p108, %p109
    %p111 = scmp.le.s32.totalorder 1, %s9
    %p112 = scmp.lt.s32.totalorder %s9, 3
    %p113 = pnand %p111, %p112
    %p114 = pneg %p113
    // Predicated region
    $region9: #{tpu_custom_call.1} parent=5 // pred_check
      _
    $region10: #{tpu_custom_call.1} parent=5 // pred_check_branch
      %116 = sbr.rel (%p113) target = $region12
    $region11: #{tpu_custom_call.1} parent=5 // pred_region
      %s117 = ssub.s32 %s9, 1
      // Predicated region
      $region13: #{tpu_custom_call.1} parent=11 // pred_check
        %p118 = pneg %p56
      $region14: #{tpu_custom_call.1} parent=11 // pred_check_branch
        %120 = sbr.rel (%p118) target = $region16
      $region15: #{tpu_custom_call.1} parent=11 // pred_region
        _
      $region16: #{tpu_custom_call.1} parent=11 // pred_fallthru
        _
      // Predicated region
      $region17: #{tpu_custom_call.1} parent=11 // pred_check
        %p121 = pneg %p77
      $region18: #{tpu_custom_call.1} parent=11 // pred_check_branch
        %123 = sbr.rel (%p121) target = $region20
      $region19: #{tpu_custom_call.1} parent=11 // pred_region
        _
      $region20: #{tpu_custom_call.1} parent=11 // pred_fallthru
        _
    $region12: #{tpu_custom_call.1} parent=5 // pred_fallthru
      _
    %p124 = scmp.lt.s32.totalorder %s9, 2
    // Predicated region
    $region21: #{tpu_custom_call.1} parent=5 // pred_check
      %p125 = pneg %p124
    $region22: #{tpu_custom_call.1} parent=5 // pred_check_branch
      %127 = sbr.rel (%p125) target = $region24
    $region23: #{tpu_custom_call.1} parent=5 // pred_region
      // Predicated region
      $region25: #{tpu_custom_call.1} parent=23 // pred_check
        %p128 = pneg %p29
      $region26: #{tpu_custom_call.1} parent=23 // pred_check_branch
        %130 = sbr.rel (%p128) target = $region28
      $region27: #{tpu_custom_call.1} parent=23 // pred_region
        %s131 = smul.u32 22, %s9
        %p132 = scmp.lt.s32.totalorder %s131, 43
        %s133 = scalar_select %p132, %s131, 43
        %s134 = smul.addr %s133, 17
        %s135 = smul.addr %s134, 4
        %s136 = scalar_lea.vmem %s0, %s135
        %s137 = smul.u32 22, %s9
      $region28: #{tpu_custom_call.1} parent=23 // pred_fallthru
        _
    $region24: #{tpu_custom_call.1} parent=5 // pred_fallthru
      _
    %p138 = scmp.le.s32.totalorder 1, %s9
    %p139 = scmp.lt.s32.totalorder %s9, 3
    %p140 = pnand %p138, %p139
    %p141 = pneg %p140
    // Predicated region
    $region29: #{tpu_custom_call.1} parent=5 // pred_check
      _
    $region30: #{tpu_custom_call.1} parent=5 // pred_check_branch
      %143 = sbr.rel (%p140) target = $region32
    $region31: #{tpu_custom_call.1} parent=5 // pred_region
      %s144 = ssub.s32 %s9, 1
      %s145 = smul.u32 22, %s14
      %p146 = scmp.lt.s32.totalorder %s145, 43
      %s147 = scalar_select %p146, %s145, 43
      %s148 = smul.addr %s147, 17
      %s149 = smul.addr %s148, 4
      %s150 = scalar_lea.vmem %s0, %s149
      %p151 = pneg %p35
      %p152 = pneg %p32
      %p153 = pneg %p56
      %p154 = pneg %p53
      %p155 = pneg %p77
      %p156 = pneg %p74
      %p157 = pneg %p103
      %p158 = pneg %p100
      %s159 = smul.u32 22, %s14
      %p160 = scmp.lt.s32.totalorder %s159, 43
      %s161 = scalar_select %p160, %s159, 43
      %s162 = smul.addr %s161, 8
      %s163 = scalar_lea.vmem %s3, %s162
      %s164 = smul.u32 22, %s14
      %p165 = scmp.lt.s32.totalorder %s164, 43
      %s166 = scalar_select %p165, %s164, 43
      %s167 = smul.addr %s166, 17
      %s168 = smul.addr %s167, 4
      %s169 = scalar_lea.vmem %s0, %s168
      %s170 = smul.u32 22, %s14
      %s171 = smul.u32 22, %s14
      %p172 = scmp.lt.s32.totalorder %s171, 43
      %s173 = scalar_select %p172, %s171, 43
      %s174 = smul.addr %s173, 8
      %s175 = scalar_lea.vmem %s3, %s174
      %s176 = smul.u32 22, %s14
      %v178 = vld [vmem:[%s169] sm:$0xff]
      %v179 = vld [vmem:[%s169 + $0x8] sm:$0xff]
      %v180 = vld [vmem:[%s169 + $0x10] sm:$0xff]
      %v181 = vld [vmem:[%s169 + $0x18] sm:$0xff]
      %v182 = vld [vmem:[%s169 + $0x20] sm:$0xff]
      %v183 = vld [vmem:[%s169 + $0x28] sm:$0xff]
      %v184 = vld [vmem:[%s169 + $0x30] sm:$0xff]
      %v185 = vld [vmem:[%s169 + $0x38] sm:$0xff]
      %v186 = vld [vmem:[%s169 + $0x40] sm:$0xf]
      %v187 = vld [vmem:[%s169 + $0x44] sm:$0xff]
      %v188 = vld [vmem:[%s169 + $0x4c] sm:$0xff]
      %v189 = vld [vmem:[%s169 + $0x54] sm:$0xff]
      %v190 = vld [vmem:[%s169 + $0x5c] sm:$0xff]
      %v191 = vld [vmem:[%s169 + $0x64] sm:$0xff]
      %v192 = vld [vmem:[%s169 + $0x6c] sm:$0xff]
      %v193 = vld [vmem:[%s169 + $0x74] sm:$0xff]
      %v194 = vld [vmem:[%s169 + $0x7c] sm:$0xff]
      %v195 = vld [vmem:[%s169 + $0x84] sm:$0xf]
      %v196 = vld [vmem:[%s169 + $0x88] sm:$0xff]
      %v197 = vld [vmem:[%s169 + $0x90] sm:$0xff]
      %v198 = vld [vmem:[%s169 + $0x98] sm:$0xff]
      %v199 = vld [vmem:[%s169 + $0xa0] sm:$0xff]
      %v200 = vld [vmem:[%s169 + $0xa8] sm:$0xff]
      %v201 = vld [vmem:[%s169 + $0xb0] sm:$0xff]
      %v202 = vld [vmem:[%s169 + $0xb8] sm:$0xff]
      %v203 = vld [vmem:[%s169 + $0xc0] sm:$0xff]
      %v204 = vld [vmem:[%s169 + $0xc8] sm:$0xf]
      %v205 = vld [vmem:[%s169 + $0xcc] sm:$0xff]
      %v206 = vld [vmem:[%s169 + $0xd4] sm:$0xff]
      %v207 = vld [vmem:[%s169 + $0xdc] sm:$0xff]
      %v208 = vld [vmem:[%s169 + $0xe4] sm:$0xff]
      %v209 = vld [vmem:[%s169 + $0xec] sm:$0xff]
      %v210 = vld [vmem:[%s169 + $0xf4] sm:$0xff]
      %v211 = vld [vmem:[%s169 + $0xfc] sm:$0xff]
      %v212 = vld [vmem:[%s169 + $0x104] sm:$0xff]
      %v213 = vld [vmem:[%s169 + $0x10c] sm:$0xf]
      %v214 = vld [vmem:[%s169 + $0x110] sm:$0xff]
      %v215 = vld [vmem:[%s169 + $0x118] sm:$0xff]
      %v216 = vld [vmem:[%s169 + $0x120] sm:$0xff]
      %v217 = vld [vmem:[%s169 + $0x128] sm:$0xff]
      %v218 = vld [vmem:[%s169 + $0x130] sm:$0xff]
      %v219 = vld [vmem:[%s169 + $0x138] sm:$0xff]
      %v220 = vld [vmem:[%s169 + $0x140] sm:$0xff]
      %v221 = vld [vmem:[%s169 + $0x148] sm:$0xff]
      %v222 = vld [vmem:[%s169 + $0x150] sm:$0xf]
      %v223 = vld [vmem:[%s169 + $0x154] sm:$0xff]
      %v224 = vld [vmem:[%s169 + $0x15c] sm:$0xff]
      %v225 = vld [vmem:[%s169 + $0x164] sm:$0xff]
      %v226 = vld [vmem:[%s169 + $0x16c] sm:$0xff]
      %v227 = vld [vmem:[%s169 + $0x174] sm:$0xff]
      %v228 = vld [vmem:[%s169 + $0x17c] sm:$0xff]
      %v229 = vld [vmem:[%s169 + $0x184] sm:$0xff]
      %v230 = vld [vmem:[%s169 + $0x18c] sm:$0xff]
      %v231 = vld [vmem:[%s169 + $0x194] sm:$0xf]
      %v232 = vld [vmem:[%s169 + $0x198] sm:$0xff]
      %v233 = vld [vmem:[%s169 + $0x1a0] sm:$0xff]
      %v234 = vld [vmem:[%s169 + $0x1a8] sm:$0xff]
      %v235 = vld [vmem:[%s169 + $0x1b0] sm:$0xff]
      %v236 = vld [vmem:[%s169 + $0x1b8] sm:$0xff]
      %v237 = vld [vmem:[%s169 + $0x1c0] sm:$0xff]
      %v238 = vld [vmem:[%s169 + $0x1c8] sm:$0xff]
      %v239 = vld [vmem:[%s169 + $0x1d0] sm:$0xff]
      %v240 = vld [vmem:[%s169 + $0x1d8] sm:$0xf]
      %v241 = vld [vmem:[%s169 + $0x1dc] sm:$0xff]
      %v242 = vld [vmem:[%s169 + $0x1e4] sm:$0xff]
      %v243 = vld [vmem:[%s169 + $0x1ec] sm:$0xff]
      %v244 = vld [vmem:[%s169 + $0x1f4] sm:$0xff]
      %v245 = vld [vmem:[%s169 + $0x1fc] sm:$0xff]
      %v246 = vld [vmem:[%s169 + $0x204] sm:$0xff]
      %v247 = vld [vmem:[%s169 + $0x20c] sm:$0xff]
      %v248 = vld [vmem:[%s169 + $0x214] sm:$0xff]
      %v249 = vld [vmem:[%s169 + $0x21c] sm:$0xf]
      %v250 = vld [vmem:[%s169 + $0x220] sm:$0xff]
      %v251 = vld [vmem:[%s169 + $0x228] sm:$0xff]
      %v252 = vld [vmem:[%s169 + $0x230] sm:$0xff]
      %v253 = vld [vmem:[%s169 + $0x238] sm:$0xff]
      %v254 = vld [vmem:[%s169 + $0x240] sm:$0xff]
      %v255 = vld [vmem:[%s169 + $0x248] sm:$0xff]
      %v256 = vld [vmem:[%s169 + $0x250] sm:$0xff]
      %v257 = vld [vmem:[%s169 + $0x258] sm:$0xff]
      %v258 = vld [vmem:[%s169 + $0x260] sm:$0xf]
      %v259 = vld [vmem:[%s169 + $0x264] sm:$0xff]
      %v260 = vld [vmem:[%s169 + $0x26c] sm:$0xff]
      %v261 = vld [vmem:[%s169 + $0x274] sm:$0xff]
      %v262 = vld [vmem:[%s169 + $0x27c] sm:$0xff]
      %v263 = vld [vmem:[%s169 + $0x284] sm:$0xff]
      %v264 = vld [vmem:[%s169 + $0x28c] sm:$0xff]
      %v265 = vld [vmem:[%s169 + $0x294] sm:$0xff]
      %v266 = vld [vmem:[%s169 + $0x29c] sm:$0xff]
      %v267 = vld [vmem:[%s169 + $0x2a4] sm:$0xf]
      %v268 = vld [vmem:[%s169 + $0x2a8] sm:$0xff]
      %v269 = vld [vmem:[%s169 + $0x2b0] sm:$0xff]
      %v270 = vld [vmem:[%s169 + $0x2b8] sm:$0xff]
      %v271 = vld [vmem:[%s169 + $0x2c0] sm:$0xff]
      %v272 = vld [vmem:[%s169 + $0x2c8] sm:$0xff]
      %v273 = vld [vmem:[%s169 + $0x2d0] sm:$0xff]
      %v274 = vld [vmem:[%s169 + $0x2d8] sm:$0xff]
      %v275 = vld [vmem:[%s169 + $0x2e0] sm:$0xff]
      %v276 = vld [vmem:[%s169 + $0x2e8] sm:$0xf]
      %v277 = vld [vmem:[%s169 + $0x2ec] sm:$0xff]
      %v278 = vld [vmem:[%s169 + $0x2f4] sm:$0xff]
      %v279 = vld [vmem:[%s169 + $0x2fc] sm:$0xff]
      %v280 = vld [vmem:[%s169 + $0x304] sm:$0xff]
      %v281 = vld [vmem:[%s169 + $0x30c] sm:$0xff]
      %v282 = vld [vmem:[%s169 + $0x314] sm:$0xff]
      %v283 = vld [vmem:[%s169 + $0x31c] sm:$0xff]
      %v284 = vld [vmem:[%s169 + $0x324] sm:$0xff]
      %v285 = vld [vmem:[%s169 + $0x32c] sm:$0xf]
      %v286 = vld [vmem:[%s169 + $0x330] sm:$0xff]
      %v287 = vld [vmem:[%s169 + $0x338] sm:$0xff]
      %v288 = vld [vmem:[%s169 + $0x340] sm:$0xff]
      %v289 = vld [vmem:[%s169 + $0x348] sm:$0xff]
      %v290 = vld [vmem:[%s169 + $0x350] sm:$0xff]
      %v291 = vld [vmem:[%s169 + $0x358] sm:$0xff]
      %v292 = vld [vmem:[%s169 + $0x360] sm:$0xff]
      %v293 = vld [vmem:[%s169 + $0x368] sm:$0xff]
      %v294 = vld [vmem:[%s169 + $0x370] sm:$0xf]
      %v295 = vld [vmem:[%s169 + $0x374] sm:$0xff]
      %v296 = vld [vmem:[%s169 + $0x37c] sm:$0xff]
      %v297 = vld [vmem:[%s169 + $0x384] sm:$0xff]
      %v298 = vld [vmem:[%s169 + $0x38c] sm:$0xff]
      %v299 = vld [vmem:[%s169 + $0x394] sm:$0xff]
      %v300 = vld [vmem:[%s169 + $0x39c] sm:$0xff]
      %v301 = vld [vmem:[%s169 + $0x3a4] sm:$0xff]
      %v302 = vld [vmem:[%s169 + $0x3ac] sm:$0xff]
      %v303 = vld [vmem:[%s169 + $0x3b4] sm:$0xf]
      %v304 = vld [vmem:[%s169 + $0x3b8] sm:$0xff]
      %v305 = vld [vmem:[%s169 + $0x3c0] sm:$0xff]
      %v306 = vld [vmem:[%s169 + $0x3c8] sm:$0xff]
      %v307 = vld [vmem:[%s169 + $0x3d0] sm:$0xff]
      %v308 = vld [vmem:[%s169 + $0x3d8] sm:$0xff]
      %v309 = vld [vmem:[%s169 + $0x3e0] sm:$0xff]
      %v310 = vld [vmem:[%s169 + $0x3e8] sm:$0xff]
      %v311 = vld [vmem:[%s169 + $0x3f0] sm:$0xff]
      %v312 = vld [vmem:[%s169 + $0x3f8] sm:$0xf]
      %v313 = vld [vmem:[%s169 + $0x3fc] sm:$0xff]
      %v314 = vld [vmem:[%s169 + $0x404] sm:$0xff]
      %v315 = vld [vmem:[%s169 + $0x40c] sm:$0xff]
      %v316 = vld [vmem:[%s169 + $0x414] sm:$0xff]
      %v317 = vld [vmem:[%s169 + $0x41c] sm:$0xff]
      %v318 = vld [vmem:[%s169 + $0x424] sm:$0xff]
      %v319 = vld [vmem:[%s169 + $0x42c] sm:$0xff]
      %v320 = vld [vmem:[%s169 + $0x434] sm:$0xff]
      %v321 = vld [vmem:[%s169 + $0x43c] sm:$0xf]
      %v322 = vld [vmem:[%s169 + $0x440] sm:$0xff]
      %v323 = vld [vmem:[%s169 + $0x448] sm:$0xff]
      %v324 = vld [vmem:[%s169 + $0x450] sm:$0xff]
      %v325 = vld [vmem:[%s169 + $0x458] sm:$0xff]
      %v326 = vld [vmem:[%s169 + $0x460] sm:$0xff]
      %v327 = vld [vmem:[%s169 + $0x468] sm:$0xff]
      %v328 = vld [vmem:[%s169 + $0x470] sm:$0xff]
      %v329 = vld [vmem:[%s169 + $0x478] sm:$0xff]
      %v330 = vld [vmem:[%s169 + $0x480] sm:$0xf]
      %v331 = vld [vmem:[%s169 + $0x484] sm:$0xff]
      %v332 = vld [vmem:[%s169 + $0x48c] sm:$0xff]
      %v333 = vld [vmem:[%s169 + $0x494] sm:$0xff]
      %v334 = vld [vmem:[%s169 + $0x49c] sm:$0xff]
      %v335 = vld [vmem:[%s169 + $0x4a4] sm:$0xff]
      %v336 = vld [vmem:[%s169 + $0x4ac] sm:$0xff]
      %v337 = vld [vmem:[%s169 + $0x4b4] sm:$0xff]
      %v338 = vld [vmem:[%s169 + $0x4bc] sm:$0xff]
      %v339 = vld [vmem:[%s169 + $0x4c4] sm:$0xf]
      %v340 = vld [vmem:[%s169 + $0x4c8] sm:$0xff]
      %v341 = vld [vmem:[%s169 + $0x4d0] sm:$0xff]
      %v342 = vld [vmem:[%s169 + $0x4d8] sm:$0xff]
      %v343 = vld [vmem:[%s169 + $0x4e0] sm:$0xff]
      %v344 = vld [vmem:[%s169 + $0x4e8] sm:$0xff]
      %v345 = vld [vmem:[%s169 + $0x4f0] sm:$0xff]
      %v346 = vld [vmem:[%s169 + $0x4f8] sm:$0xff]
      %v347 = vld [vmem:[%s169 + $0x500] sm:$0xff]
      %v348 = vld [vmem:[%s169 + $0x508] sm:$0xf]
      %v349 = vld [vmem:[%s169 + $0x50c] sm:$0xff]
      %v350 = vld [vmem:[%s169 + $0x514] sm:$0xff]
      %v351 = vld [vmem:[%s169 + $0x51c] sm:$0xff]
      %v352 = vld [vmem:[%s169 + $0x524] sm:$0xff]
      %v353 = vld [vmem:[%s169 + $0x52c] sm:$0xff]
      %v354 = vld [vmem:[%s169 + $0x534] sm:$0xff]
      %v355 = vld [vmem:[%s169 + $0x53c] sm:$0xff]
      %v356 = vld [vmem:[%s169 + $0x544] sm:$0xff]
      %v357 = vld [vmem:[%s169 + $0x54c] sm:$0xf]
      %v358 = vld [vmem:[%s169 + $0x550] sm:$0xff]
      %v359 = vld [vmem:[%s169 + $0x558] sm:$0xff]
      %v360 = vld [vmem:[%s169 + $0x560] sm:$0xff]
      %v361 = vld [vmem:[%s169 + $0x568] sm:$0xff]
      %v362 = vld [vmem:[%s169 + $0x570] sm:$0xff]
      %v363 = vld [vmem:[%s169 + $0x578] sm:$0xff]
      %v364 = vld [vmem:[%s169 + $0x580] sm:$0xff]
      %v365 = vld [vmem:[%s169 + $0x588] sm:$0xff]
      %v366 = vld [vmem:[%s169 + $0x590] sm:$0xf]
      %v367 = vld [vmem:[%s169 + $0x594] sm:$0xff]
      %v368 = vld [vmem:[%s169 + $0x59c] sm:$0xff]
      %v369 = vld [vmem:[%s169 + $0x5a4] sm:$0xff]
      %v370 = vld [vmem:[%s169 + $0x5ac] sm:$0xff]
      %v371 = vld [vmem:[%s169 + $0x5b4] sm:$0xff]
      %v372 = vld [vmem:[%s169 + $0x5bc] sm:$0xff]
      %v373 = vld [vmem:[%s169 + $0x5c4] sm:$0xff]
      %v374 = vld [vmem:[%s169 + $0x5cc] sm:$0xff]
      %v375 = vld [vmem:[%s169 + $0x5d4] sm:$0xf]
      %v376 = vld [vmem:[%s2] sm:$0xff]
      %v377 = vld [vmem:[%s2 + $0x8] sm:$0xff]
      %v378 = vld [vmem:[%s2 + $0x10] sm:$0x1]
      %v379 = vunpack.c.l.bf16 %v178
      %v380 = vunpack.c.h.bf16 %v178
      %v381 = vunpack.c.l.bf16 %v179
      %v382 = vunpack.c.h.bf16 %v179
      %v383 = vunpack.c.l.bf16 %v180
      %v384 = vunpack.c.h.bf16 %v180
      %v385 = vunpack.c.l.bf16 %v181
      %v386 = vunpack.c.h.bf16 %v181
      %v387 = vunpack.c.l.bf16 %v182
      %v388 = vunpack.c.h.bf16 %v182
      %v389 = vunpack.c.l.bf16 %v183
      %v390 = vunpack.c.h.bf16 %v183
      %v391 = vunpack.c.l.bf16 %v184
      %v392 = vunpack.c.h.bf16 %v184
      %v393 = vunpack.c.l.bf16 %v185
      %v394 = vunpack.c.h.bf16 %v185
      %v395 = vunpack.c.l.bf16 %v186
      %v396 = vunpack.c.l.bf16 %v187
      %v397 = vunpack.c.h.bf16 %v187
      %v398 = vunpack.c.l.bf16 %v188
      %v399 = vunpack.c.h.bf16 %v188
      %v400 = vunpack.c.l.bf16 %v189
      %v401 = vunpack.c.h.bf16 %v189
      %v402 = vunpack.c.l.bf16 %v190
      %v403 = vunpack.c.h.bf16 %v190
      %v404 = vunpack.c.l.bf16 %v191
      %v405 = vunpack.c.h.bf16 %v191
      %v406 = vunpack.c.l.bf16 %v192
      %v407 = vunpack.c.h.bf16 %v192
      %v408 = vunpack.c.l.bf16 %v193
      %v409 = vunpack.c.h.bf16 %v193
      %v410 = vunpack.c.l.bf16 %v194
      %v411 = vunpack.c.h.bf16 %v194
      %v412 = vunpack.c.l.bf16 %v195
      %v413 = vunpack.c.l.bf16 %v196
      %v414 = vunpack.c.h.bf16 %v196
      %v415 = vunpack.c.l.bf16 %v197
      %v416 = vunpack.c.h.bf16 %v197
      %v417 = vunpack.c.l.bf16 %v198
      %v418 = vunpack.c.h.bf16 %v198
      %v419 = vunpack.c.l.bf16 %v199
      %v420 = vunpack.c.h.bf16 %v199
      %v421 = vunpack.c.l.bf16 %v200
      %v422 = vunpack.c.h.bf16 %v200
      %v423 = vunpack.c.l.bf16 %v201
      %v424 = vunpack.c.h.bf16 %v201
      %v425 = vunpack.c.l.bf16 %v202
      %v426 = vunpack.c.h.bf16 %v202
      %v427 = vunpack.c.l.bf16 %v203
      %v428 = vunpack.c.h.bf16 %v203
      %v429 = vunpack.c.l.bf16 %v204
      %v430 = vunpack.c.l.bf16 %v205
      %v431 = vunpack.c.h.bf16 %v205
      %v432 = vunpack.c.l.bf16 %v206
      %v433 = vunpack.c.h.bf16 %v206
      %v434 = vunpack.c.l.bf16 %v207
      %v435 = vunpack.c.h.bf16 %v207
      %v436 = vunpack.c.l.bf16 %v208
      %v437 = vunpack.c.h.bf16 %v208
      %v438 = vunpack.c.l.bf16 %v209
      %v439 = vunpack.c.h.bf16 %v209
      %v440 = vunpack.c.l.bf16 %v210
      %v441 = vunpack.c.h.bf16 %v210
      %v442 = vunpack.c.l.bf16 %v211
      %v443 = vunpack.c.h.bf16 %v211
      %v444 = vunpack.c.l.bf16 %v212
      %v445 = vunpack.c.h.bf16 %v212
      %v446 = vunpack.c.l.bf16 %v213
      %v447 = vunpack.c.l.bf16 %v214
      %v448 = vunpack.c.h.bf16 %v214
      %v449 = vunpack.c.l.bf16 %v215
      %v450 = vunpack.c.h.bf16 %v215
      %v451 = vunpack.c.l.bf16 %v216
      %v452 = vunpack.c.h.bf16 %v216
      %v453 = vunpack.c.l.bf16 %v217
      %v454 = vunpack.c.h.bf16 %v217
      %v455 = vunpack.c.l.bf16 %v218
      %v456 = vunpack.c.h.bf16 %v218
      %v457 = vunpack.c.l.bf16 %v219
      %v458 = vunpack.c.h.bf16 %v219
      %v459 = vunpack.c.l.bf16 %v220
      %v460 = vunpack.c.h.bf16 %v220
      %v461 = vunpack.c.l.bf16 %v221
      %v462 = vunpack.c.h.bf16 %v221
      %v463 = vunpack.c.l.bf16 %v222
      %v464 = vunpack.c.l.bf16 %v223
      %v465 = vunpack.c.h.bf16 %v223
      %v466 = vunpack.c.l.bf16 %v224
      %v467 = vunpack.c.h.bf16 %v224
      %v468 = vunpack.c.l.bf16 %v225
      %v469 = vunpack.c.h.bf16 %v225
      %v470 = vunpack.c.l.bf16 %v226
      %v471 = vunpack.c.h.bf16 %v226
      %v472 = vunpack.c.l.bf16 %v227
      %v473 = vunpack.c.h.bf16 %v227
      %v474 = vunpack.c.l.bf16 %v228
      %v475 = vunpack.c.h.bf16 %v228
      %v476 = vunpack.c.l.bf16 %v229
      %v477 = vunpack.c.h.bf16 %v229
      %v478 = vunpack.c.l.bf16 %v230
      %v479 = vunpack.c.h.bf16 %v230
      %v480 = vunpack.c.l.bf16 %v231
      %v481 = vunpack.c.l.bf16 %v232
      %v482 = vunpack.c.h.bf16 %v232
      %v483 = vunpack.c.l.bf16 %v233
      %v484 = vunpack.c.h.bf16 %v233
      %v485 = vunpack.c.l.bf16 %v234
      %v486 = vunpack.c.h.bf16 %v234
      %v487 = vunpack.c.l.bf16 %v235
      %v488 = vunpack.c.h.bf16 %v235
      %v489 = vunpack.c.l.bf16 %v236
      %v490 = vunpack.c.h.bf16 %v236
      %v491 = vunpack.c.l.bf16 %v237
      %v492 = vunpack.c.h.bf16 %v237
      %v493 = vunpack.c.l.bf16 %v238
      %v494 = vunpack.c.h.bf16 %v238
      %v495 = vunpack.c.l.bf16 %v239
      %v496 = vunpack.c.h.bf16 %v239
      %v497 = vunpack.c.l.bf16 %v240
      %v498 = vunpack.c.l.bf16 %v241
      %v499 = vunpack.c.h.bf16 %v241
      %v500 = vunpack.c.l.bf16 %v242
      %v501 = vunpack.c.h.bf16 %v242
      %v502 = vunpack.c.l.bf16 %v243
      %v503 = vunpack.c.h.bf16 %v243
      %v504 = vunpack.c.l.bf16 %v244
      %v505 = vunpack.c.h.bf16 %v244
      %v506 = vunpack.c.l.bf16 %v245
      %v507 = vunpack.c.h.bf16 %v245
      %v508 = vunpack.c.l.bf16 %v246
      %v509 = vunpack.c.h.bf16 %v246
      %v510 = vunpack.c.l.bf16 %v247
      %v511 = vunpack.c.h.bf16 %v247
      %v512 = vunpack.c.l.bf16 %v248
      %v513 = vunpack.c.h.bf16 %v248
      %v514 = vunpack.c.l.bf16 %v249
      %v515 = vunpack.c.l.bf16 %v250
      %v516 = vunpack.c.h.bf16 %v250
      %v517 = vunpack.c.l.bf16 %v251
      %v518 = vunpack.c.h.bf16 %v251
      %v519 = vunpack.c.l.bf16 %v252
      %v520 = vunpack.c.h.bf16 %v252
      %v521 = vunpack.c.l.bf16 %v253
      %v522 = vunpack.c.h.bf16 %v253
      %v523 = vunpack.c.l.bf16 %v254
      %v524 = vunpack.c.h.bf16 %v254
      %v525 = vunpack.c.l.bf16 %v255
      %v526 = vunpack.c.h.bf16 %v255
      %v527 = vunpack.c.l.bf16 %v256
      %v528 = vunpack.c.h.bf16 %v256
      %v529 = vunpack.c.l.bf16 %v257
      %v530 = vunpack.c.h.bf16 %v257
      %v531 = vunpack.c.l.bf16 %v258
      %v532 = vunpack.c.l.bf16 %v259
      %v533 = vunpack.c.h.bf16 %v259
      %v534 = vunpack.c.l.bf16 %v260
      %v535 = vunpack.c.h.bf16 %v260
      %v536 = vunpack.c.l.bf16 %v261
      %v537 = vunpack.c.h.bf16 %v261
      %v538 = vunpack.c.l.bf16 %v262
      %v539 = vunpack.c.h.bf16 %v262
      %v540 = vunpack.c.l.bf16 %v263
      %v541 = vunpack.c.h.bf16 %v263
      %v542 = vunpack.c.l.bf16 %v264
      %v543 = vunpack.c.h.bf16 %v264
      %v544 = vunpack.c.l.bf16 %v265
      %v545 = vunpack.c.h.bf16 %v265
      %v546 = vunpack.c.l.bf16 %v266
      %v547 = vunpack.c.h.bf16 %v266
      %v548 = vunpack.c.l.bf16 %v267
      %v549 = vunpack.c.l.bf16 %v268
      %v550 = vunpack.c.h.bf16 %v268
      %v551 = vunpack.c.l.bf16 %v269
      %v552 = vunpack.c.h.bf16 %v269
      %v553 = vunpack.c.l.bf16 %v270
      %v554 = vunpack.c.h.bf16 %v270
      %v555 = vunpack.c.l.bf16 %v271
      %v556 = vunpack.c.h.bf16 %v271
      %v557 = vunpack.c.l.bf16 %v272
      %v558 = vunpack.c.h.bf16 %v272
      %v559 = vunpack.c.l.bf16 %v273
      %v560 = vunpack.c.h.bf16 %v273
      %v561 = vunpack.c.l.bf16 %v274
      %v562 = vunpack.c.h.bf16 %v274
      %v563 = vunpack.c.l.bf16 %v275
      %v564 = vunpack.c.h.bf16 %v275
      %v565 = vunpack.c.l.bf16 %v276
      %v566 = vunpack.c.l.bf16 %v277
      %v567 = vunpack.c.h.bf16 %v277
      %v568 = vunpack.c.l.bf16 %v278
      %v569 = vunpack.c.h.bf16 %v278
      %v570 = vunpack.c.l.bf16 %v279
      %v571 = vunpack.c.h.bf16 %v279
      %v572 = vunpack.c.l.bf16 %v280
      %v573 = vunpack.c.h.bf16 %v280
      %v574 = vunpack.c.l.bf16 %v281
      %v575 = vunpack.c.h.bf16 %v281
      %v576 = vunpack.c.l.bf16 %v282
      %v577 = vunpack.c.h.bf16 %v282
      %v578 = vunpack.c.l.bf16 %v283
      %v579 = vunpack.c.h.bf16 %v283
      %v580 = vunpack.c.l.bf16 %v284
      %v581 = vunpack.c.h.bf16 %v284
      %v582 = vunpack.c.l.bf16 %v285
      %v583 = vunpack.c.l.bf16 %v286
      %v584 = vunpack.c.h.bf16 %v286
      %v585 = vunpack.c.l.bf16 %v287
      %v586 = vunpack.c.h.bf16 %v287
      %v587 = vunpack.c.l.bf16 %v288
      %v588 = vunpack.c.h.bf16 %v288
      %v589 = vunpack.c.l.bf16 %v289
      %v590 = vunpack.c.h.bf16 %v289
      %v591 = vunpack.c.l.bf16 %v290
      %v592 = vunpack.c.h.bf16 %v290
      %v593 = vunpack.c.l.bf16 %v291
      %v594 = vunpack.c.h.bf16 %v291
      %v595 = vunpack.c.l.bf16 %v292
      %v596 = vunpack.c.h.bf16 %v292
      %v597 = vunpack.c.l.bf16 %v293
      %v598 = vunpack.c.h.bf16 %v293
      %v599 = vunpack.c.l.bf16 %v294
      %v600 = vunpack.c.l.bf16 %v295
      %v601 = vunpack.c.h.bf16 %v295
      %v602 = vunpack.c.l.bf16 %v296
      %v603 = vunpack.c.h.bf16 %v296
      %v604 = vunpack.c.l.bf16 %v297
      %v605 = vunpack.c.h.bf16 %v297
      %v606 = vunpack.c.l.bf16 %v298
      %v607 = vunpack.c.h.bf16 %v298
      %v608 = vunpack.c.l.bf16 %v299
      %v609 = vunpack.c.h.bf16 %v299
      %v610 = vunpack.c.l.bf16 %v300
      %v611 = vunpack.c.h.bf16 %v300
      %v612 = vunpack.c.l.bf16 %v301
      %v613 = vunpack.c.h.bf16 %v301
      %v614 = vunpack.c.l.bf16 %v302
      %v615 = vunpack.c.h.bf16 %v302
      %v616 = vunpack.c.l.bf16 %v303
      %v617 = vunpack.c.l.bf16 %v304
      %v618 = vunpack.c.h.bf16 %v304
      %v619 = vunpack.c.l.bf16 %v305
      %v620 = vunpack.c.h.bf16 %v305
      %v621 = vunpack.c.l.bf16 %v306
      %v622 = vunpack.c.h.bf16 %v306
      %v623 = vunpack.c.l.bf16 %v307
      %v624 = vunpack.c.h.bf16 %v307
      %v625 = vunpack.c.l.bf16 %v308
      %v626 = vunpack.c.h.bf16 %v308
      %v627 = vunpack.c.l.bf16 %v309
      %v628 = vunpack.c.h.bf16 %v309
      %v629 = vunpack.c.l.bf16 %v310
      %v630 = vunpack.c.h.bf16 %v310
      %v631 = vunpack.c.l.bf16 %v311
      %v632 = vunpack.c.h.bf16 %v311
      %v633 = vunpack.c.l.bf16 %v312
      %v634 = vunpack.c.l.bf16 %v313
      %v635 = vunpack.c.h.bf16 %v313
      %v636 = vunpack.c.l.bf16 %v314
      %v637 = vunpack.c.h.bf16 %v314
      %v638 = vunpack.c.l.bf16 %v315
      %v639 = vunpack.c.h.bf16 %v315
      %v640 = vunpack.c.l.bf16 %v316
      %v641 = vunpack.c.h.bf16 %v316
      %v642 = vunpack.c.l.bf16 %v317
      %v643 = vunpack.c.h.bf16 %v317
      %v644 = vunpack.c.l.bf16 %v318
      %v645 = vunpack.c.h.bf16 %v318
      %v646 = vunpack.c.l.bf16 %v319
      %v647 = vunpack.c.h.bf16 %v319
      %v648 = vunpack.c.l.bf16 %v320
      %v649 = vunpack.c.h.bf16 %v320
      %v650 = vunpack.c.l.bf16 %v321
      %v651 = vunpack.c.l.bf16 %v322
      %v652 = vunpack.c.h.bf16 %v322
      %v653 = vunpack.c.l.bf16 %v323
      %v654 = vunpack.c.h.bf16 %v323
      %v655 = vunpack.c.l.bf16 %v324
      %v656 = vunpack.c.h.bf16 %v324
      %v657 = vunpack.c.l.bf16 %v325
      %v658 = vunpack.c.h.bf16 %v325
      %v659 = vunpack.c.l.bf16 %v326
      %v660 = vunpack.c.h.bf16 %v326
      %v661 = vunpack.c.l.bf16 %v327
      %v662 = vunpack.c.h.bf16 %v327
      %v663 = vunpack.c.l.bf16 %v328
      %v664 = vunpack.c.h.bf16 %v328
      %v665 = vunpack.c.l.bf16 %v329
      %v666 = vunpack.c.h.bf16 %v329
      %v667 = vunpack.c.l.bf16 %v330
      %v668 = vunpack.c.l.bf16 %v331
      %v669 = vunpack.c.h.bf16 %v331
      %v670 = vunpack.c.l.bf16 %v332
      %v671 = vunpack.c.h.bf16 %v332
      %v672 = vunpack.c.l.bf16 %v333
      %v673 = vunpack.c.h.bf16 %v333
      %v674 = vunpack.c.l.bf16 %v334
      %v675 = vunpack.c.h.bf16 %v334
      %v676 = vunpack.c.l.bf16 %v335
      %v677 = vunpack.c.h.bf16 %v335
      %v678 = vunpack.c.l.bf16 %v336
      %v679 = vunpack.c.h.bf16 %v336
      %v680 = vunpack.c.l.bf16 %v337
      %v681 = vunpack.c.h.bf16 %v337
      %v682 = vunpack.c.l.bf16 %v338
      %v683 = vunpack.c.h.bf16 %v338
      %v684 = vunpack.c.l.bf16 %v339
      %v685 = vunpack.c.l.bf16 %v340
      %v686 = vunpack.c.h.bf16 %v340
      %v687 = vunpack.c.l.bf16 %v341
      %v688 = vunpack.c.h.bf16 %v341
      %v689 = vunpack.c.l.bf16 %v342
      %v690 = vunpack.c.h.bf16 %v342
      %v691 = vunpack.c.l.bf16 %v343
      %v692 = vunpack.c.h.bf16 %v343
      %v693 = vunpack.c.l.bf16 %v344
      %v694 = vunpack.c.h.bf16 %v344
      %v695 = vunpack.c.l.bf16 %v345
      %v696 = vunpack.c.h.bf16 %v345
      %v697 = vunpack.c.l.bf16 %v346
      %v698 = vunpack.c.h.bf16 %v346
      %v699 = vunpack.c.l.bf16 %v347
      %v700 = vunpack.c.h.bf16 %v347
      %v701 = vunpack.c.l.bf16 %v348
      %v702 = vunpack.c.l.bf16 %v349
      %v703 = vunpack.c.h.bf16 %v349
      %v704 = vunpack.c.l.bf16 %v350
      %v705 = vunpack.c.h.bf16 %v350
      %v706 = vunpack.c.l.bf16 %v351
      %v707 = vunpack.c.h.bf16 %v351
      %v708 = vunpack.c.l.bf16 %v352
      %v709 = vunpack.c.h.bf16 %v352
      %v710 = vunpack.c.l.bf16 %v353
      %v711 = vunpack.c.h.bf16 %v353
      %v712 = vunpack.c.l.bf16 %v354
      %v713 = vunpack.c.h.bf16 %v354
      %v714 = vunpack.c.l.bf16 %v355
      %v715 = vunpack.c.h.bf16 %v355
      %v716 = vunpack.c.l.bf16 %v356
      %v717 = vunpack.c.h.bf16 %v356
      %v718 = vunpack.c.l.bf16 %v357
      %v719 = vunpack.c.l.bf16 %v358
      %v720 = vunpack.c.h.bf16 %v358
      %v721 = vunpack.c.l.bf16 %v359
      %v722 = vunpack.c.h.bf16 %v359
      %v723 = vunpack.c.l.bf16 %v360
      %v724 = vunpack.c.h.bf16 %v360
      %v725 = vunpack.c.l.bf16 %v361
      %v726 = vunpack.c.h.bf16 %v361
      %v727 = vunpack.c.l.bf16 %v362
      %v728 = vunpack.c.h.bf16 %v362
      %v729 = vunpack.c.l.bf16 %v363
      %v730 = vunpack.c.h.bf16 %v363
      %v731 = vunpack.c.l.bf16 %v364
      %v732 = vunpack.c.h.bf16 %v364
      %v733 = vunpack.c.l.bf16 %v365
      %v734 = vunpack.c.h.bf16 %v365
      %v735 = vunpack.c.l.bf16 %v366
      %v736 = vunpack.c.l.bf16 %v367
      %v737 = vunpack.c.h.bf16 %v367
      %v738 = vunpack.c.l.bf16 %v368
      %v739 = vunpack.c.h.bf16 %v368
      %v740 = vunpack.c.l.bf16 %v369
      %v741 = vunpack.c.h.bf16 %v369
      %v742 = vunpack.c.l.bf16 %v370
      %v743 = vunpack.c.h.bf16 %v370
      %v744 = vunpack.c.l.bf16 %v371
      %v745 = vunpack.c.h.bf16 %v371
      %v746 = vunpack.c.l.bf16 %v372
      %v747 = vunpack.c.h.bf16 %v372
      %v748 = vunpack.c.l.bf16 %v373
      %v749 = vunpack.c.h.bf16 %v373
      %v750 = vunpack.c.l.bf16 %v374
      %v751 = vunpack.c.h.bf16 %v374
      %v752 = vunpack.c.l.bf16 %v375
      %v756 = vlaneseq
      %v757 = vshrl.u32 %v756, 7
      %v758 = vsub.s32 0, %v757
      %v759 = vrot.slane %v376, %v758
      %v760 = vlaneseq
      %v761 = vshrl.u32 %v760, 7
      %v762 = vsub.s32 1, %v761
      %v763 = vrot.slane %v376, %v762
      %v764 = vlaneseq
      %v765 = vshrl.u32 %v764, 7
      %v766 = vsub.s32 2, %v765
      %v767 = vrot.slane %v376, %v766
      %v768 = vlaneseq
      %v769 = vshrl.u32 %v768, 7
      %v770 = vsub.s32 3, %v769
      %v771 = vrot.slane %v376, %v770
      %v772 = vlaneseq
      %v773 = vshrl.u32 %v772, 7
      %v774 = vsub.s32 4, %v773
      %v775 = vrot.slane %v376, %v774
      %v776 = vlaneseq
      %v777 = vshrl.u32 %v776, 7
      %v778 = vsub.s32 5, %v777
      %v779 = vrot.slane %v376, %v778
      %v780 = vlaneseq
      %v781 = vshrl.u32 %v780, 7
      %v782 = vsub.s32 6, %v781
      %v783 = vrot.slane %v376, %v782
      %v784 = vlaneseq
      %v785 = vshrl.u32 %v784, 7
      %v786 = vsub.s32 7, %v785
      %v787 = vrot.slane %v376, %v786
      %v788 = vlaneseq
      %v789 = vshrl.u32 %v788, 7
      %v790 = vsub.s32 0, %v789
      %v791 = vrot.slane %v377, %v790
      %v792 = vlaneseq
      %v793 = vshrl.u32 %v792, 7
      %v794 = vsub.s32 1, %v793
      %v795 = vrot.slane %v377, %v794
      %v796 = vlaneseq
      %v797 = vshrl.u32 %v796, 7
      %v798 = vsub.s32 2, %v797
      %v799 = vrot.slane %v377, %v798
      %v800 = vlaneseq
      %v801 = vshrl.u32 %v800, 7
      %v802 = vsub.s32 3, %v801
      %v803 = vrot.slane %v377, %v802
      %v804 = vlaneseq
      %v805 = vshrl.u32 %v804, 7
      %v806 = vsub.s32 4, %v805
      %v807 = vrot.slane %v377, %v806
      %v808 = vlaneseq
      %v809 = vshrl.u32 %v808, 7
      %v810 = vsub.s32 5, %v809
      %v811 = vrot.slane %v377, %v810
      %v812 = vlaneseq
      %v813 = vshrl.u32 %v812, 7
      %v814 = vsub.s32 6, %v813
      %v815 = vrot.slane %v377, %v814
      %v816 = vlaneseq
      %v817 = vshrl.u32 %v816, 7
      %v818 = vsub.s32 7, %v817
      %v819 = vrot.slane %v377, %v818
      %v820 = vlaneseq
      %v821 = vshrl.u32 %v820, 7
      %v822 = vsub.s32 0, %v821
      %v823 = vrot.slane %v378, %v822
      %v841 = vmul.f32 %v379, %v759
      %v842 = vmul.f32 %v380, %v763
      %v843 = vmul.f32 %v381, %v767
      %v844 = vmul.f32 %v382, %v771
      %v845 = vmul.f32 %v383, %v775
      %v846 = vmul.f32 %v384, %v779
      %v847 = vmul.f32 %v385, %v783
      %v848 = vmul.f32 %v386, %v787
      %v849 = vmul.f32 %v387, %v791
      %v850 = vmul.f32 %v388, %v795
      %v851 = vmul.f32 %v389, %v799
      %v852 = vmul.f32 %v390, %v803
      %v853 = vmul.f32 %v391, %v807
      %v854 = vmul.f32 %v392, %v811
      %v855 = vmul.f32 %v393, %v815
      %v856 = vmul.f32 %v394, %v819
      %v857 = vmul.f32 %v395, %v823
      %v858 = vmul.f32 %v396, %v759
      %v859 = vmul.f32 %v397, %v763
      %v860 = vmul.f32 %v398, %v767
      %v861 = vmul.f32 %v399, %v771
      %v862 = vmul.f32 %v400, %v775
      %v863 = vmul.f32 %v401, %v779
      %v864 = vmul.f32 %v402, %v783
      %v865 = vmul.f32 %v403, %v787
      %v866 = vmul.f32 %v404, %v791
      %v867 = vmul.f32 %v405, %v795
      %v868 = vmul.f32 %v406, %v799
      %v869 = vmul.f32 %v407, %v803
      %v870 = vmul.f32 %v408, %v807
      %v871 = vmul.f32 %v409, %v811
      %v872 = vmul.f32 %v410, %v815
      %v873 = vmul.f32 %v411, %v819
      %v874 = vmul.f32 %v412, %v823
      %v875 = vmul.f32 %v413, %v759
      %v876 = vmul.f32 %v414, %v763
      %v877 = vmul.f32 %v415, %v767
      %v878 = vmul.f32 %v416, %v771
      %v879 = vmul.f32 %v417, %v775
      %v880 = vmul.f32 %v418, %v779
      %v881 = vmul.f32 %v419, %v783
      %v882 = vmul.f32 %v420, %v787
      %v883 = vmul.f32 %v421, %v791
      %v884 = vmul.f32 %v422, %v795
      %v885 = vmul.f32 %v423, %v799
      %v886 = vmul.f32 %v424, %v803
      %v887 = vmul.f32 %v425, %v807
      %v888 = vmul.f32 %v426, %v811
      %v889 = vmul.f32 %v427, %v815
      %v890 = vmul.f32 %v428, %v819
      %v891 = vmul.f32 %v429, %v823
      %v892 = vmul.f32 %v430, %v759
      %v893 = vmul.f32 %v431, %v763
      %v894 = vmul.f32 %v432, %v767
      %v895 = vmul.f32 %v433, %v771
      %v896 = vmul.f32 %v434, %v775
      %v897 = vmul.f32 %v435, %v779
      %v898 = vmul.f32 %v436, %v783
      %v899 = vmul.f32 %v437, %v787
      %v900 = vmul.f32 %v438, %v791
      %v901 = vmul.f32 %v439, %v795
      %v902 = vmul.f32 %v440, %v799
      %v903 = vmul.f32 %v441, %v803
      %v904 = vmul.f32 %v442, %v807
      %v905 = vmul.f32 %v443, %v811
      %v906 = vmul.f32 %v444, %v815
      %v907 = vmul.f32 %v445, %v819
      %v908 = vmul.f32 %v446, %v823
      %v909 = vmul.f32 %v447, %v759
      %v910 = vmul.f32 %v448, %v763
      %v911 = vmul.f32 %v449, %v767
      %v912 = vmul.f32 %v450, %v771
      %v913 = vmul.f32 %v451, %v775
      %v914 = vmul.f32 %v452, %v779
      %v915 = vmul.f32 %v453, %v783
      %v916 = vmul.f32 %v454, %v787
      %v917 = vmul.f32 %v455, %v791
      %v918 = vmul.f32 %v456, %v795
      %v919 = vmul.f32 %v457, %v799
      %v920 = vmul.f32 %v458, %v803
      %v921 = vmul.f32 %v459, %v807
      %v922 = vmul.f32 %v460, %v811
      %v923 = vmul.f32 %v461, %v815
      %v924 = vmul.f32 %v462, %v819
      %v925 = vmul.f32 %v463, %v823
      %v926 = vmul.f32 %v464, %v759
      %v927 = vmul.f32 %v465, %v763
      %v928 = vmul.f32 %v466, %v767
      %v929 = vmul.f32 %v467, %v771
      %v930 = vmul.f32 %v468, %v775
      %v931 = vmul.f32 %v469, %v779
      %v932 = vmul.f32 %v470, %v783
      %v933 = vmul.f32 %v471, %v787
      %v934 = vmul.f32 %v472, %v791
      %v935 = vmul.f32 %v473, %v795
      %v936 = vmul.f32 %v474, %v799
      %v937 = vmul.f32 %v475, %v803
      %v938 = vmul.f32 %v476, %v807
      %v939 = vmul.f32 %v477, %v811
      %v940 = vmul.f32 %v478, %v815
      %v941 = vmul.f32 %v479, %v819
      %v942 = vmul.f32 %v480, %v823
      %v943 = vmul.f32 %v481, %v759
      %v944 = vmul.f32 %v482, %v763
      %v945 = vmul.f32 %v483, %v767
      %v946 = vmul.f32 %v484, %v771
      %v947 = vmul.f32 %v485, %v775
      %v948 = vmul.f32 %v486, %v779
      %v949 = vmul.f32 %v487, %v783
      %v950 = vmul.f32 %v488, %v787
      %v951 = vmul.f32 %v489, %v791
      %v952 = vmul.f32 %v490, %v795
      %v953 = vmul.f32 %v491, %v799
      %v954 = vmul.f32 %v492, %v803
      %v955 = vmul.f32 %v493, %v807
      %v956 = vmul.f32 %v494, %v811
      %v957 = vmul.f32 %v495, %v815
      %v958 = vmul.f32 %v496, %v819
      %v959 = vmul.f32 %v497, %v823
      %v960 = vmul.f32 %v498, %v759
      %v961 = vmul.f32 %v499, %v763
      %v962 = vmul.f32 %v500, %v767
      %v963 = vmul.f32 %v501, %v771
      %v964 = vmul.f32 %v502, %v775
      %v965 = vmul.f32 %v503, %v779
      %v966 = vmul.f32 %v504, %v783
      %v967 = vmul.f32 %v505, %v787
      %v968 = vmul.f32 %v506, %v791
      %v969 = vmul.f32 %v507, %v795
      %v970 = vmul.f32 %v508, %v799
      %v971 = vmul.f32 %v509, %v803
      %v972 = vmul.f32 %v510, %v807
      %v973 = vmul.f32 %v511, %v811
      %v974 = vmul.f32 %v512, %v815
      %v975 = vmul.f32 %v513, %v819
      %v976 = vmul.f32 %v514, %v823
      %v977 = vmul.f32 %v515, %v759
      %v978 = vmul.f32 %v516, %v763
      %v979 = vmul.f32 %v517, %v767
      %v980 = vmul.f32 %v518, %v771
      %v981 = vmul.f32 %v519, %v775
      %v982 = vmul.f32 %v520, %v779
      %v983 = vmul.f32 %v521, %v783
      %v984 = vmul.f32 %v522, %v787
      %v985 = vmul.f32 %v523, %v791
      %v986 = vmul.f32 %v524, %v795
      %v987 = vmul.f32 %v525, %v799
      %v988 = vmul.f32 %v526, %v803
      %v989 = vmul.f32 %v527, %v807
      %v990 = vmul.f32 %v528, %v811
      %v991 = vmul.f32 %v529, %v815
      %v992 = vmul.f32 %v530, %v819
      %v993 = vmul.f32 %v531, %v823
      %v994 = vmul.f32 %v532, %v759
      %v995 = vmul.f32 %v533, %v763
      %v996 = vmul.f32 %v534, %v767
      %v997 = vmul.f32 %v535, %v771
      %v998 = vmul.f32 %v536, %v775
      %v999 = vmul.f32 %v537, %v779
      %v1000 = vmul.f32 %v538, %v783
      %v1001 = vmul.f32 %v539, %v787
      %v1002 = vmul.f32 %v540, %v791
      %v1003 = vmul.f32 %v541, %v795
      %v1004 = vmul.f32 %v542, %v799
      %v1005 = vmul.f32 %v543, %v803
      %v1006 = vmul.f32 %v544, %v807
      %v1007 = vmul.f32 %v545, %v811
      %v1008 = vmul.f32 %v546, %v815
      %v1009 = vmul.f32 %v547, %v819
      %v1010 = vmul.f32 %v548, %v823
      %v1011 = vmul.f32 %v549, %v759
      %v1012 = vmul.f32 %v550, %v763
      %v1013 = vmul.f32 %v551, %v767
      %v1014 = vmul.f32 %v552, %v771
      %v1015 = vmul.f32 %v553, %v775
      %v1016 = vmul.f32 %v554, %v779
      %v1017 = vmul.f32 %v555, %v783
      %v1018 = vmul.f32 %v556, %v787
      %v1019 = vmul.f32 %v557, %v791
      %v1020 = vmul.f32 %v558, %v795
      %v1021 = vmul.f32 %v559, %v799
      %v1022 = vmul.f32 %v560, %v803
      %v1023 = vmul.f32 %v561, %v807
      %v1024 = vmul.f32 %v562, %v811
      %v1025 = vmul.f32 %v563, %v815
      %v1026 = vmul.f32 %v564, %v819
      %v1027 = vmul.f32 %v565, %v823
      %v1028 = vmul.f32 %v566, %v759
      %v1029 = vmul.f32 %v567, %v763
      %v1030 = vmul.f32 %v568, %v767
      %v1031 = vmul.f32 %v569, %v771
      %v1032 = vmul.f32 %v570, %v775
      %v1033 = vmul.f32 %v571, %v779
      %v1034 = vmul.f32 %v572, %v783
      %v1035 = vmul.f32 %v573, %v787
      %v1036 = vmul.f32 %v574, %v791
      %v1037 = vmul.f32 %v575, %v795
      %v1038 = vmul.f32 %v576, %v799
      %v1039 = vmul.f32 %v577, %v803
      %v1040 = vmul.f32 %v578, %v807
      %v1041 = vmul.f32 %v579, %v811
      %v1042 = vmul.f32 %v580, %v815
      %v1043 = vmul.f32 %v581, %v819
      %v1044 = vmul.f32 %v582, %v823
      %v1045 = vmul.f32 %v583, %v759
      %v1046 = vmul.f32 %v584, %v763
      %v1047 = vmul.f32 %v585, %v767
      %v1048 = vmul.f32 %v586, %v771
      %v1049 = vmul.f32 %v587, %v775
      %v1050 = vmul.f32 %v588, %v779
      %v1051 = vmul.f32 %v589, %v783
      %v1052 = vmul.f32 %v590, %v787
      %v1053 = vmul.f32 %v591, %v791
      %v1054 = vmul.f32 %v592, %v795
      %v1055 = vmul.f32 %v593, %v799
      %v1056 = vmul.f32 %v594, %v803
      %v1057 = vmul.f32 %v595, %v807
      %v1058 = vmul.f32 %v596, %v811
      %v1059 = vmul.f32 %v597, %v815
      %v1060 = vmul.f32 %v598, %v819
      %v1061 = vmul.f32 %v599, %v823
      %v1062 = vmul.f32 %v600, %v759
      %v1063 = vmul.f32 %v601, %v763
      %v1064 = vmul.f32 %v602, %v767
      %v1065 = vmul.f32 %v603, %v771
      %v1066 = vmul.f32 %v604, %v775
      %v1067 = vmul.f32 %v605, %v779
      %v1068 = vmul.f32 %v606, %v783
      %v1069 = vmul.f32 %v607, %v787
      %v1070 = vmul.f32 %v608, %v791
      %v1071 = vmul.f32 %v609, %v795
      %v1072 = vmul.f32 %v610, %v799
      %v1073 = vmul.f32 %v611, %v803
      %v1074 = vmul.f32 %v612, %v807
      %v1075 = vmul.f32 %v613, %v811
      %v1076 = vmul.f32 %v614, %v815
      %v1077 = vmul.f32 %v615, %v819
      %v1078 = vmul.f32 %v616, %v823
      %v1079 = vmul.f32 %v617, %v759
      %v1080 = vmul.f32 %v618, %v763
      %v1081 = vmul.f32 %v619, %v767
      %v1082 = vmul.f32 %v620, %v771
      %v1083 = vmul.f32 %v621, %v775
      %v1084 = vmul.f32 %v622, %v779
      %v1085 = vmul.f32 %v623, %v783
      %v1086 = vmul.f32 %v624, %v787
      %v1087 = vmul.f32 %v625, %v791
      %v1088 = vmul.f32 %v626, %v795
      %v1089 = vmul.f32 %v627, %v799
      %v1090 = vmul.f32 %v628, %v803
      %v1091 = vmul.f32 %v629, %v807
      %v1092 = vmul.f32 %v630, %v811
      %v1093 = vmul.f32 %v631, %v815
      %v1094 = vmul.f32 %v632, %v819
      %v1095 = vmul.f32 %v633, %v823
      %v1096 = vmul.f32 %v634, %v759
      %v1097 = vmul.f32 %v635, %v763
      %v1098 = vmul.f32 %v636, %v767
      %v1099 = vmul.f32 %v637, %v771
      %v1100 = vmul.f32 %v638, %v775
      %v1101 = vmul.f32 %v639, %v779
      %v1102 = vmul.f32 %v640, %v783
      %v1103 = vmul.f32 %v641, %v787
      %v1104 = vmul.f32 %v642, %v791
      %v1105 = vmul.f32 %v643, %v795
      %v1106 = vmul.f32 %v644, %v799
      %v1107 = vmul.f32 %v645, %v803
      %v1108 = vmul.f32 %v646, %v807
      %v1109 = vmul.f32 %v647, %v811
      %v1110 = vmul.f32 %v648, %v815
      %v1111 = vmul.f32 %v649, %v819
      %v1112 = vmul.f32 %v650, %v823
      %v1113 = vmul.f32 %v651, %v759
      %v1114 = vmul.f32 %v652, %v763
      %v1115 = vmul.f32 %v653, %v767
      %v1116 = vmul.f32 %v654, %v771
      %v1117 = vmul.f32 %v655, %v775
      %v1118 = vmul.f32 %v656, %v779
      %v1119 = vmul.f32 %v657, %v783
      %v1120 = vmul.f32 %v658, %v787
      %v1121 = vmul.f32 %v659, %v791
      %v1122 = vmul.f32 %v660, %v795
      %v1123 = vmul.f32 %v661, %v799
      %v1124 = vmul.f32 %v662, %v803
      %v1125 = vmul.f32 %v663, %v807
      %v1126 = vmul.f32 %v664, %v811
      %v1127 = vmul.f32 %v665, %v815
      %v1128 = vmul.f32 %v666, %v819
      %v1129 = vmul.f32 %v667, %v823
      %v1130 = vmul.f32 %v668, %v759
      %v1131 = vmul.f32 %v669, %v763
      %v1132 = vmul.f32 %v670, %v767
      %v1133 = vmul.f32 %v671, %v771
      %v1134 = vmul.f32 %v672, %v775
      %v1135 = vmul.f32 %v673, %v779
      %v1136 = vmul.f32 %v674, %v783
      %v1137 = vmul.f32 %v675, %v787
      %v1138 = vmul.f32 %v676, %v791
      %v1139 = vmul.f32 %v677, %v795
      %v1140 = vmul.f32 %v678, %v799
      %v1141 = vmul.f32 %v679, %v803
      %v1142 = vmul.f32 %v680, %v807
      %v1143 = vmul.f32 %v681, %v811
      %v1144 = vmul.f32 %v682, %v815
      %v1145 = vmul.f32 %v683, %v819
      %v1146 = vmul.f32 %v684, %v823
      %v1147 = vmul.f32 %v685, %v759
      %v1148 = vmul.f32 %v686, %v763
      %v1149 = vmul.f32 %v687, %v767
      %v1150 = vmul.f32 %v688, %v771
      %v1151 = vmul.f32 %v689, %v775
      %v1152 = vmul.f32 %v690, %v779
      %v1153 = vmul.f32 %v691, %v783
      %v1154 = vmul.f32 %v692, %v787
      %v1155 = vmul.f32 %v693, %v791
      %v1156 = vmul.f32 %v694, %v795
      %v1157 = vmul.f32 %v695, %v799
      %v1158 = vmul.f32 %v696, %v803
      %v1159 = vmul.f32 %v697, %v807
      %v1160 = vmul.f32 %v698, %v811
      %v1161 = vmul.f32 %v699, %v815
      %v1162 = vmul.f32 %v700, %v819
      %v1163 = vmul.f32 %v701, %v823
      %v1164 = vmul.f32 %v702, %v759
      %v1165 = vmul.f32 %v703, %v763
      %v1166 = vmul.f32 %v704, %v767
      %v1167 = vmul.f32 %v705, %v771
      %v1168 = vmul.f32 %v706, %v775
      %v1169 = vmul.f32 %v707, %v779
      %v1170 = vmul.f32 %v708, %v783
      %v1171 = vmul.f32 %v709, %v787
      %v1172 = vmul.f32 %v710, %v791
      %v1173 = vmul.f32 %v711, %v795
      %v1174 = vmul.f32 %v712, %v799
      %v1175 = vmul.f32 %v713, %v803
      %v1176 = vmul.f32 %v714, %v807
      %v1177 = vmul.f32 %v715, %v811
      %v1178 = vmul.f32 %v716, %v815
      %v1179 = vmul.f32 %v717, %v819
      %v1180 = vmul.f32 %v718, %v823
      %v1181 = vmul.f32 %v719, %v759
      %v1182 = vmul.f32 %v720, %v763
      %v1183 = vmul.f32 %v721, %v767
      %v1184 = vmul.f32 %v722, %v771
      %v1185 = vmul.f32 %v723, %v775
      %v1186 = vmul.f32 %v724, %v779
      %v1187 = vmul.f32 %v725, %v783
      %v1188 = vmul.f32 %v726, %v787
      %v1189 = vmul.f32 %v727, %v791
      %v1190 = vmul.f32 %v728, %v795
      %v1191 = vmul.f32 %v729, %v799
      %v1192 = vmul.f32 %v730, %v803
      %v1193 = vmul.f32 %v731, %v807
      %v1194 = vmul.f32 %v732, %v811
      %v1195 = vmul.f32 %v733, %v815
      %v1196 = vmul.f32 %v734, %v819
      %v1197 = vmul.f32 %v735, %v823
      %v1198 = vmul.f32 %v736, %v759
      %v1199 = vmul.f32 %v737, %v763
      %v1200 = vmul.f32 %v738, %v767
      %v1201 = vmul.f32 %v739, %v771
      %v1202 = vmul.f32 %v740, %v775
      %v1203 = vmul.f32 %v741, %v779
      %v1204 = vmul.f32 %v742, %v783
      %v1205 = vmul.f32 %v743, %v787
      %v1206 = vmul.f32 %v744, %v791
      %v1207 = vmul.f32 %v745, %v795
      %v1208 = vmul.f32 %v746, %v799
      %v1209 = vmul.f32 %v747, %v803
      %v1210 = vmul.f32 %v748, %v807
      %v1211 = vmul.f32 %v749, %v811
      %v1212 = vmul.f32 %v750, %v815
      %v1213 = vmul.f32 %v751, %v819
      %v1214 = vmul.f32 %v752, %v823
      %v1215 = vpack.c.bf16 %v858, %v841
      %v1216 = vpack.c.bf16 %v859, %v842
      %v1217 = vpack.c.bf16 %v860, %v843
      %v1218 = vpack.c.bf16 %v861, %v844
      %v1219 = vpack.c.bf16 %v862, %v845
      %v1220 = vpack.c.bf16 %v863, %v846
      %v1221 = vpack.c.bf16 %v864, %v847
      %v1222 = vpack.c.bf16 %v865, %v848
      %v1223 = vpack.c.bf16 %v866, %v849
      %v1224 = vpack.c.bf16 %v867, %v850
      %v1225 = vpack.c.bf16 %v868, %v851
      %v1226 = vpack.c.bf16 %v869, %v852
      %v1227 = vpack.c.bf16 %v870, %v853
      %v1228 = vpack.c.bf16 %v871, %v854
      %v1229 = vpack.c.bf16 %v872, %v855
      %v1230 = vpack.c.bf16 %v873, %v856
      %v1231 = vpack.c.bf16 %v874, %v857
      %v1232 = vpack.c.bf16 %v892, %v875
      %v1233 = vpack.c.bf16 %v893, %v876
      %v1234 = vpack.c.bf16 %v894, %v877
      %v1235 = vpack.c.bf16 %v895, %v878
      %v1236 = vpack.c.bf16 %v896, %v879
      %v1237 = vpack.c.bf16 %v897, %v880
      %v1238 = vpack.c.bf16 %v898, %v881
      %v1239 = vpack.c.bf16 %v899, %v882
      %v1240 = vpack.c.bf16 %v900, %v883
      %v1241 = vpack.c.bf16 %v901, %v884
      %v1242 = vpack.c.bf16 %v902, %v885
      %v1243 = vpack.c.bf16 %v903, %v886
      %v1244 = vpack.c.bf16 %v904, %v887
      %v1245 = vpack.c.bf16 %v905, %v888
      %v1246 = vpack.c.bf16 %v906, %v889
      %v1247 = vpack.c.bf16 %v907, %v890
      %v1248 = vpack.c.bf16 %v908, %v891
      %v1249 = vpack.c.bf16 %v926, %v909
      %v1250 = vpack.c.bf16 %v927, %v910
      %v1251 = vpack.c.bf16 %v928, %v911
      %v1252 = vpack.c.bf16 %v929, %v912
      %v1253 = vpack.c.bf16 %v930, %v913
      %v1254 = vpack.c.bf16 %v931, %v914
      %v1255 = vpack.c.bf16 %v932, %v915
      %v1256 = vpack.c.bf16 %v933, %v916
      %v1257 = vpack.c.bf16 %v934, %v917
      %v1258 = vpack.c.bf16 %v935, %v918
      %v1259 = vpack.c.bf16 %v936, %v919
      %v1260 = vpack.c.bf16 %v937, %v920
      %v1261 = vpack.c.bf16 %v938, %v921
      %v1262 = vpack.c.bf16 %v939, %v922
      %v1263 = vpack.c.bf16 %v940, %v923
      %v1264 = vpack.c.bf16 %v941, %v924
      %v1265 = vpack.c.bf16 %v942, %v925
      %v1266 = vpack.c.bf16 %v960, %v943
      %v1267 = vpack.c.bf16 %v961, %v944
      %v1268 = vpack.c.bf16 %v962, %v945
      %v1269 = vpack.c.bf16 %v963, %v946
      %v1270 = vpack.c.bf16 %v964, %v947
      %v1271 = vpack.c.bf16 %v965, %v948
      %v1272 = vpack.c.bf16 %v966, %v949
      %v1273 = vpack.c.bf16 %v967, %v950
      %v1274 = vpack.c.bf16 %v968, %v951
      %v1275 = vpack.c.bf16 %v969, %v952
      %v1276 = vpack.c.bf16 %v970, %v953
      %v1277 = vpack.c.bf16 %v971, %v954
      %v1278 = vpack.c.bf16 %v972, %v955
      %v1279 = vpack.c.bf16 %v973, %v956
      %v1280 = vpack.c.bf16 %v974, %v957
      %v1281 = vpack.c.bf16 %v975, %v958
      %v1282 = vpack.c.bf16 %v976, %v959
      %v1283 = vpack.c.bf16 %v994, %v977
      %v1284 = vpack.c.bf16 %v995, %v978
      %v1285 = vpack.c.bf16 %v996, %v979
      %v1286 = vpack.c.bf16 %v997, %v980
      %v1287 = vpack.c.bf16 %v998, %v981
      %v1288 = vpack.c.bf16 %v999, %v982
      %v1289 = vpack.c.bf16 %v1000, %v983
      %v1290 = vpack.c.bf16 %v1001, %v984
      %v1291 = vpack.c.bf16 %v1002, %v985
      %v1292 = vpack.c.bf16 %v1003, %v986
      %v1293 = vpack.c.bf16 %v1004, %v987
      %v1294 = vpack.c.bf16 %v1005, %v988
      %v1295 = vpack.c.bf16 %v1006, %v989
      %v1296 = vpack.c.bf16 %v1007, %v990
      %v1297 = vpack.c.bf16 %v1008, %v991
      %v1298 = vpack.c.bf16 %v1009, %v992
      %v1299 = vpack.c.bf16 %v1010, %v993
      %v1300 = vpack.c.bf16 %v1028, %v1011
      %v1301 = vpack.c.bf16 %v1029, %v1012
      %v1302 = vpack.c.bf16 %v1030, %v1013
      %v1303 = vpack.c.bf16 %v1031, %v1014
      %v1304 = vpack.c.bf16 %v1032, %v1015
      %v1305 = vpack.c.bf16 %v1033, %v1016
      %v1306 = vpack.c.bf16 %v1034, %v1017
      %v1307 = vpack.c.bf16 %v1035, %v1018
      %v1308 = vpack.c.bf16 %v1036, %v1019
      %v1309 = vpack.c.bf16 %v1037, %v1020
      %v1310 = vpack.c.bf16 %v1038, %v1021
      %v1311 = vpack.c.bf16 %v1039, %v1022
      %v1312 = vpack.c.bf16 %v1040, %v1023
      %v1313 = vpack.c.bf16 %v1041, %v1024
      %v1314 = vpack.c.bf16 %v1042, %v1025
      %v1315 = vpack.c.bf16 %v1043, %v1026
      %v1316 = vpack.c.bf16 %v1044, %v1027
      %v1317 = vpack.c.bf16 %v1062, %v1045
      %v1318 = vpack.c.bf16 %v1063, %v1046
      %v1319 = vpack.c.bf16 %v1064, %v1047
      %v1320 = vpack.c.bf16 %v1065, %v1048
      %v1321 = vpack.c.bf16 %v1066, %v1049
      %v1322 = vpack.c.bf16 %v1067, %v1050
      %v1323 = vpack.c.bf16 %v1068, %v1051
      %v1324 = vpack.c.bf16 %v1069, %v1052
      %v1325 = vpack.c.bf16 %v1070, %v1053
      %v1326 = vpack.c.bf16 %v1071, %v1054
      %v1327 = vpack.c.bf16 %v1072, %v1055
      %v1328 = vpack.c.bf16 %v1073, %v1056
      %v1329 = vpack.c.bf16 %v1074, %v1057
      %v1330 = vpack.c.bf16 %v1075, %v1058
      %v1331 = vpack.c.bf16 %v1076, %v1059
      %v1332 = vpack.c.bf16 %v1077, %v1060
      %v1333 = vpack.c.bf16 %v1078, %v1061
      %v1334 = vpack.c.bf16 %v1096, %v1079
      %v1335 = vpack.c.bf16 %v1097, %v1080
      %v1336 = vpack.c.bf16 %v1098, %v1081
      %v1337 = vpack.c.bf16 %v1099, %v1082
      %v1338 = vpack.c.bf16 %v1100, %v1083
      %v1339 = vpack.c.bf16 %v1101, %v1084
      %v1340 = vpack.c.bf16 %v1102, %v1085
      %v1341 = vpack.c.bf16 %v1103, %v1086
      %v1342 = vpack.c.bf16 %v1104, %v1087
      %v1343 = vpack.c.bf16 %v1105, %v1088
      %v1344 = vpack.c.bf16 %v1106, %v1089
      %v1345 = vpack.c.bf16 %v1107, %v1090
      %v1346 = vpack.c.bf16 %v1108, %v1091
      %v1347 = vpack.c.bf16 %v1109, %v1092
      %v1348 = vpack.c.bf16 %v1110, %v1093
      %v1349 = vpack.c.bf16 %v1111, %v1094
      %v1350 = vpack.c.bf16 %v1112, %v1095
      %v1351 = vpack.c.bf16 %v1130, %v1113
      %v1352 = vpack.c.bf16 %v1131, %v1114
      %v1353 = vpack.c.bf16 %v1132, %v1115
      %v1354 = vpack.c.bf16 %v1133, %v1116
      %v1355 = vpack.c.bf16 %v1134, %v1117
      %v1356 = vpack.c.bf16 %v1135, %v1118
      %v1357 = vpack.c.bf16 %v1136, %v1119
      %v1358 = vpack.c.bf16 %v1137, %v1120
      %v1359 = vpack.c.bf16 %v1138, %v1121
      %v1360 = vpack.c.bf16 %v1139, %v1122
      %v1361 = vpack.c.bf16 %v1140, %v1123
      %v1362 = vpack.c.bf16 %v1141, %v1124
      %v1363 = vpack.c.bf16 %v1142, %v1125
      %v1364 = vpack.c.bf16 %v1143, %v1126
      %v1365 = vpack.c.bf16 %v1144, %v1127
      %v1366 = vpack.c.bf16 %v1145, %v1128
      %v1367 = vpack.c.bf16 %v1146, %v1129
      %v1368 = vpack.c.bf16 %v1164, %v1147
      %v1369 = vpack.c.bf16 %v1165, %v1148
      %v1370 = vpack.c.bf16 %v1166, %v1149
      %v1371 = vpack.c.bf16 %v1167, %v1150
      %v1372 = vpack.c.bf16 %v1168, %v1151
      %v1373 = vpack.c.bf16 %v1169, %v1152
      %v1374 = vpack.c.bf16 %v1170, %v1153
      %v1375 = vpack.c.bf16 %v1171, %v1154
      %v1376 = vpack.c.bf16 %v1172, %v1155
      %v1377 = vpack.c.bf16 %v1173, %v1156
      %v1378 = vpack.c.bf16 %v1174, %v1157
      %v1379 = vpack.c.bf16 %v1175, %v1158
      %v1380 = vpack.c.bf16 %v1176, %v1159
      %v1381 = vpack.c.bf16 %v1177, %v1160
      %v1382 = vpack.c.bf16 %v1178, %v1161
      %v1383 = vpack.c.bf16 %v1179, %v1162
      %v1384 = vpack.c.bf16 %v1180, %v1163
      %v1385 = vpack.c.bf16 %v1198, %v1181
      %v1386 = vpack.c.bf16 %v1199, %v1182
      %v1387 = vpack.c.bf16 %v1200, %v1183
      %v1388 = vpack.c.bf16 %v1201, %v1184
      %v1389 = vpack.c.bf16 %v1202, %v1185
      %v1390 = vpack.c.bf16 %v1203, %v1186
      %v1391 = vpack.c.bf16 %v1204, %v1187
      %v1392 = vpack.c.bf16 %v1205, %v1188
      %v1393 = vpack.c.bf16 %v1206, %v1189
      %v1394 = vpack.c.bf16 %v1207, %v1190
      %v1395 = vpack.c.bf16 %v1208, %v1191
      %v1396 = vpack.c.bf16 %v1209, %v1192
      %v1397 = vpack.c.bf16 %v1210, %v1193
      %v1398 = vpack.c.bf16 %v1211, %v1194
      %v1399 = vpack.c.bf16 %v1212, %v1195
      %v1400 = vpack.c.bf16 %v1213, %v1196
      %v1401 = vpack.c.bf16 %v1214, %v1197
      %v1402 = vld [vmem:[%s1] sm:$0xff]
      %v1403 = vld [vmem:[%s1 + $0x8] sm:$0xff]
      %v1404 = vld [vmem:[%s1 + $0x10] sm:$0xff]
      %v1405 = vld [vmem:[%s1 + $0x18] sm:$0xff]
      %v1406 = vld [vmem:[%s1 + $0x20] sm:$0xff]
      %v1407 = vld [vmem:[%s1 + $0x28] sm:$0xff]
      %v1408 = vld [vmem:[%s1 + $0x30] sm:$0xff]
      %v1409 = vld [vmem:[%s1 + $0x38] sm:$0xff]
      %v1410 = vld [vmem:[%s1 + $0x40] sm:$0xff]
      %v1411 = vld [vmem:[%s1 + $0x48] sm:$0xff]
      %v1412 = vld [vmem:[%s1 + $0x50] sm:$0xff]
      %v1413 = vld [vmem:[%s1 + $0x58] sm:$0xff]
      %v1414 = vld [vmem:[%s1 + $0x60] sm:$0xff]
      %v1415 = vld [vmem:[%s1 + $0x68] sm:$0xff]
      %v1416 = vld [vmem:[%s1 + $0x70] sm:$0xff]
      %v1417 = vld [vmem:[%s1 + $0x78] sm:$0xff]
      %v1418 = vld [vmem:[%s1 + $0x80] sm:$0xff]
      %v1419 = vld [vmem:[%s1 + $0x88] sm:$0xff]
      %v1420 = vld [vmem:[%s1 + $0x90] sm:$0xff]
      %v1421 = vld [vmem:[%s1 + $0x98] sm:$0xff]
      %v1422 = vld [vmem:[%s1 + $0xa0] sm:$0xff]
      %v1423 = vld [vmem:[%s1 + $0xa8] sm:$0xff]
      %v1424 = vld [vmem:[%s1 + $0xb0] sm:$0xff]
      %v1425 = vld [vmem:[%s1 + $0xb8] sm:$0xff]
      %v1426 = vld [vmem:[%s1 + $0xc0] sm:$0xff]
      %v1427 = vld [vmem:[%s1 + $0xc8] sm:$0xff]
      %v1428 = vld [vmem:[%s1 + $0xd0] sm:$0xff]
      %v1429 = vld [vmem:[%s1 + $0xd8] sm:$0xff]
      %v1430 = vld [vmem:[%s1 + $0xe0] sm:$0xff]
      %v1431 = vld [vmem:[%s1 + $0xe8] sm:$0xff]
      %v1432 = vld [vmem:[%s1 + $0xf0] sm:$0xff]
      %v1433 = vld [vmem:[%s1 + $0xf8] sm:$0xff]
      %v1434 = vld [vmem:[%s1 + $0x100] sm:$0xff]
      %v1435 = vld [vmem:[%s1 + $0x108] sm:$0xff]
      %v1436 = vld [vmem:[%s1 + $0x110] sm:$0xff]
      %v1437 = vld [vmem:[%s1 + $0x118] sm:$0xff]
      %v1438 = vld [vmem:[%s1 + $0x120] sm:$0xff]
      %v1439 = vld [vmem:[%s1 + $0x128] sm:$0xff]
      %v1440 = vld [vmem:[%s1 + $0x130] sm:$0xff]
      %v1441 = vld [vmem:[%s1 + $0x138] sm:$0xff]
      %v1442 = vld [vmem:[%s1 + $0x140] sm:$0xff]
      %v1443 = vld [vmem:[%s1 + $0x148] sm:$0xff]
      %v1444 = vld [vmem:[%s1 + $0x150] sm:$0xff]
      %v1445 = vld [vmem:[%s1 + $0x158] sm:$0xff]
      %v1446 = vld [vmem:[%s1 + $0x160] sm:$0xff]
      %v1447 = vld [vmem:[%s1 + $0x168] sm:$0xff]
      %v1448 = vld [vmem:[%s1 + $0x170] sm:$0xff]
      %v1449 = vld [vmem:[%s1 + $0x178] sm:$0xff]
      %v1450 = vld [vmem:[%s1 + $0x180] sm:$0xff]
      %v1451 = vld [vmem:[%s1 + $0x188] sm:$0xff]
      %v1452 = vld [vmem:[%s1 + $0x190] sm:$0xff]
      %v1453 = vld [vmem:[%s1 + $0x198] sm:$0xff]
      %v1454 = vld [vmem:[%s1 + $0x1a0] sm:$0xff]
      %v1455 = vld [vmem:[%s1 + $0x1a8] sm:$0xff]
      %v1456 = vld [vmem:[%s1 + $0x1b0] sm:$0xff]
      %v1457 = vld [vmem:[%s1 + $0x1b8] sm:$0xff]
      %v1458 = vld [vmem:[%s1 + $0x1c0] sm:$0xff]
      %v1459 = vld [vmem:[%s1 + $0x1c8] sm:$0xff]
      %v1460 = vld [vmem:[%s1 + $0x1d0] sm:$0xff]
      %v1461 = vld [vmem:[%s1 + $0x1d8] sm:$0xff]
      %v1462 = vld [vmem:[%s1 + $0x1e0] sm:$0xff]
      %v1463 = vld [vmem:[%s1 + $0x1e8] sm:$0xff]
      %v1464 = vld [vmem:[%s1 + $0x1f0] sm:$0xff]
      %v1465 = vld [vmem:[%s1 + $0x1f8] sm:$0xff]
      %v1466 = vld [vmem:[%s1 + $0x200] sm:$0xff]
      %v1467 = vld [vmem:[%s1 + $0x208] sm:$0xff]
      %v1468 = vld [vmem:[%s1 + $0x210] sm:$0xff]
      %v1469 = vld [vmem:[%s1 + $0x218] sm:$0xff]
      %v1470 = vld [vmem:[%s1 + $0x220] sm:$0xff]
      %v1471 = vld [vmem:[%s1 + $0x228] sm:$0xff]
      %v1472 = vld [vmem:[%s1 + $0x230] sm:$0xff]
      %v1473 = vld [vmem:[%s1 + $0x238] sm:$0xff]
      %v1474 = vld [vmem:[%s1 + $0x240] sm:$0xff]
      %v1475 = vld [vmem:[%s1 + $0x248] sm:$0xff]
      %v1476 = vld [vmem:[%s1 + $0x250] sm:$0xff]
      %v1477 = vld [vmem:[%s1 + $0x258] sm:$0xff]
      %v1478 = vld [vmem:[%s1 + $0x260] sm:$0xff]
      %v1479 = vld [vmem:[%s1 + $0x268] sm:$0xff]
      %v1480 = vld [vmem:[%s1 + $0x270] sm:$0xff]
      %v1481 = vld [vmem:[%s1 + $0x278] sm:$0xff]
      %v1482 = vld [vmem:[%s1 + $0x280] sm:$0xff]
      %v1483 = vld [vmem:[%s1 + $0x288] sm:$0xff]
      %v1484 = vld [vmem:[%s1 + $0x290] sm:$0xff]
      %v1485 = vld [vmem:[%s1 + $0x298] sm:$0xff]
      %v1486 = vld [vmem:[%s1 + $0x2a0] sm:$0xff]
      %v1487 = vld [vmem:[%s1 + $0x2a8] sm:$0xff]
      %v1488 = vld [vmem:[%s1 + $0x2b0] sm:$0xff]
      %v1489 = vld [vmem:[%s1 + $0x2b8] sm:$0xff]
      %v1490 = vld [vmem:[%s1 + $0x2c0] sm:$0xff]
      %v1491 = vld [vmem:[%s1 + $0x2c8] sm:$0xff]
      %v1492 = vld [vmem:[%s1 + $0x2d0] sm:$0xff]
      %v1493 = vld [vmem:[%s1 + $0x2d8] sm:$0xff]
      %v1494 = vld [vmem:[%s1 + $0x2e0] sm:$0xff]
      %v1495 = vld [vmem:[%s1 + $0x2e8] sm:$0xff]
      %v1496 = vld [vmem:[%s1 + $0x2f0] sm:$0xff]
      %v1497 = vld [vmem:[%s1 + $0x2f8] sm:$0xff]
      %v1498 = vld [vmem:[%s1 + $0x300] sm:$0xff]
      %v1499 = vld [vmem:[%s1 + $0x308] sm:$0xff]
      %v1500 = vld [vmem:[%s1 + $0x310] sm:$0xff]
      %v1501 = vld [vmem:[%s1 + $0x318] sm:$0xff]
      %v1502 = vld [vmem:[%s1 + $0x320] sm:$0xff]
      %v1503 = vld [vmem:[%s1 + $0x328] sm:$0xff]
      %v1504 = vld [vmem:[%s1 + $0x330] sm:$0xff]
      %v1505 = vld [vmem:[%s1 + $0x338] sm:$0xff]
      %v1506 = vld [vmem:[%s1 + $0x340] sm:$0xff]
      %v1507 = vld [vmem:[%s1 + $0x348] sm:$0xff]
      %v1508 = vld [vmem:[%s1 + $0x350] sm:$0xff]
      %v1509 = vld [vmem:[%s1 + $0x358] sm:$0xff]
      %v1510 = vld [vmem:[%s1 + $0x360] sm:$0xff]
      %v1511 = vld [vmem:[%s1 + $0x368] sm:$0xff]
      %v1512 = vld [vmem:[%s1 + $0x370] sm:$0xff]
      %v1513 = vld [vmem:[%s1 + $0x378] sm:$0xff]
      %v1514 = vld [vmem:[%s1 + $0x380] sm:$0xff]
      %v1515 = vld [vmem:[%s1 + $0x388] sm:$0xff]
      %v1516 = vld [vmem:[%s1 + $0x390] sm:$0xff]
      %v1517 = vld [vmem:[%s1 + $0x398] sm:$0xff]
      %v1518 = vld [vmem:[%s1 + $0x3a0] sm:$0xff]
      %v1519 = vld [vmem:[%s1 + $0x3a8] sm:$0xff]
      %v1520 = vld [vmem:[%s1 + $0x3b0] sm:$0xff]
      %v1521 = vld [vmem:[%s1 + $0x3b8] sm:$0xff]
      %v1522 = vld [vmem:[%s1 + $0x3c0] sm:$0xff]
      %v1523 = vld [vmem:[%s1 + $0x3c8] sm:$0xff]
      %v1524 = vld [vmem:[%s1 + $0x3d0] sm:$0xff]
      %v1525 = vld [vmem:[%s1 + $0x3d8] sm:$0xff]
      %v1526 = vld [vmem:[%s1 + $0x3e0] sm:$0xff]
      %v1527 = vld [vmem:[%s1 + $0x3e8] sm:$0xff]
      %v1528 = vld [vmem:[%s1 + $0x3f0] sm:$0xff]
      %v1529 = vld [vmem:[%s1 + $0x3f8] sm:$0xff]
      %v1530 = vld [vmem:[%s1 + $0x400] sm:$0xff]
      %v1531 = vld [vmem:[%s1 + $0x408] sm:$0xff]
      %v1532 = vld [vmem:[%s1 + $0x410] sm:$0xff]
      %v1533 = vld [vmem:[%s1 + $0x418] sm:$0xff]
      %v1534 = vld [vmem:[%s1 + $0x420] sm:$0xff]
      %v1535 = vld [vmem:[%s1 + $0x428] sm:$0xff]
      %v1536 = vld [vmem:[%s1 + $0x430] sm:$0xff]
      %v1537 = vld [vmem:[%s1 + $0x438] sm:$0xff]
      %v1538 = vld [vmem:[%s1 + $0x440] sm:$0xff]
      %v1539 = vld [vmem:[%s1 + $0x448] sm:$0xff]
      %v1540 = vld [vmem:[%s1 + $0x450] sm:$0xff]
      %v1541 = vld [vmem:[%s1 + $0x458] sm:$0xff]
      %v1542 = vld [vmem:[%s1 + $0x460] sm:$0xff]
      %v1543 = vld [vmem:[%s1 + $0x468] sm:$0xff]
      %v1544 = vld [vmem:[%s1 + $0x470] sm:$0xff]
      %v1545 = vld [vmem:[%s1 + $0x478] sm:$0xff]
      %v1546 = vld [vmem:[%s1 + $0x480] sm:$0xff]
      %v1547 = vld [vmem:[%s1 + $0x488] sm:$0xff]
      %v1548 = vld [vmem:[%s1 + $0x490] sm:$0xff]
      %v1549 = vld [vmem:[%s1 + $0x498] sm:$0xff]
      %v1550 = vld [vmem:[%s1 + $0x4a0] sm:$0xff]
      %v1551 = vld [vmem:[%s1 + $0x4a8] sm:$0xff]
      %v1552 = vld [vmem:[%s1 + $0x4b0] sm:$0xff]
      %v1553 = vld [vmem:[%s1 + $0x4b8] sm:$0xff]
      %v1554 = vld [vmem:[%s1 + $0x4c0] sm:$0xff]
      %v1555 = vld [vmem:[%s1 + $0x4c8] sm:$0xff]
      %v1556 = vld [vmem:[%s1 + $0x4d0] sm:$0xff]
      %v1557 = vld [vmem:[%s1 + $0x4d8] sm:$0xff]
      %v1558 = vld [vmem:[%s1 + $0x4e0] sm:$0xff]
      %v1559 = vld [vmem:[%s1 + $0x4e8] sm:$0xff]
      %v1560 = vld [vmem:[%s1 + $0x4f0] sm:$0xff]
      %v1561 = vld [vmem:[%s1 + $0x4f8] sm:$0xff]
      %v1562 = vld [vmem:[%s1 + $0x500] sm:$0xff]
      %v1563 = vld [vmem:[%s1 + $0x508] sm:$0xff]
      %v1564 = vld [vmem:[%s1 + $0x510] sm:$0xff]
      %v1565 = vld [vmem:[%s1 + $0x518] sm:$0xff]
      %v1566 = vld [vmem:[%s1 + $0x520] sm:$0xff]
      %v1567 = vld [vmem:[%s1 + $0x528] sm:$0xff]
      %v1568 = vld [vmem:[%s1 + $0x530] sm:$0xff]
      %v1569 = vld [vmem:[%s1 + $0x538] sm:$0xff]
      %v1570 = vld [vmem:[%s1 + $0x540] sm:$0xff]
      %v1571 = vld [vmem:[%s1 + $0x548] sm:$0xff]
      %v1572 = vld [vmem:[%s1 + $0x550] sm:$0xff]
      %v1573 = vld [vmem:[%s1 + $0x558] sm:$0xff]
      %v1574 = vld [vmem:[%s1 + $0x560] sm:$0xff]
      %v1575 = vld [vmem:[%s1 + $0x568] sm:$0xff]
      %v1576 = vld [vmem:[%s1 + $0x570] sm:$0xff]
      %v1577 = vld [vmem:[%s1 + $0x578] sm:$0xff]
      %v1578 = vld [vmem:[%s1 + $0x580] sm:$0xff]
      %v1579 = vld [vmem:[%s1 + $0x588] sm:$0xff]
      %v1580 = vld [vmem:[%s1 + $0x590] sm:$0xff]
      %v1581 = vld [vmem:[%s1 + $0x598] sm:$0xff]
      %v1582 = vld [vmem:[%s1 + $0x5a0] sm:$0xff]
      %v1583 = vld [vmem:[%s1 + $0x5a8] sm:$0xff]
      %v1584 = vld [vmem:[%s1 + $0x5b0] sm:$0xff]
      %v1585 = vld [vmem:[%s1 + $0x5b8] sm:$0xff]
      %v1586 = vld [vmem:[%s1 + $0x5c0] sm:$0xff]
      %v1587 = vld [vmem:[%s1 + $0x5c8] sm:$0xff]
      %v1588 = vld [vmem:[%s1 + $0x5d0] sm:$0xff]
      %v1589 = vld [vmem:[%s1 + $0x5d8] sm:$0xff]
      %v1590 = vld [vmem:[%s1 + $0x5e0] sm:$0xff]
      %v1591 = vld [vmem:[%s1 + $0x5e8] sm:$0xff]
      %v1592 = vld [vmem:[%s1 + $0x5f0] sm:$0xff]
      %v1593 = vld [vmem:[%s1 + $0x5f8] sm:$0xff]
      %v1594 = vld [vmem:[%s1 + $0x600] sm:$0xff]
      %v1595 = vld [vmem:[%s1 + $0x608] sm:$0xff]
      %v1596 = vld [vmem:[%s1 + $0x610] sm:$0xff]
      %v1597 = vld [vmem:[%s1 + $0x618] sm:$0xff]
      %v1598 = vld [vmem:[%s1 + $0x620] sm:$0xff]
      %v1599 = vld [vmem:[%s1 + $0x628] sm:$0xff]
      %v1600 = vld [vmem:[%s1 + $0x630] sm:$0xff]
      %v1601 = vld [vmem:[%s1 + $0x638] sm:$0xff]
      %v1602 = vld [vmem:[%s1 + $0x640] sm:$0xff]
      %v1603 = vld [vmem:[%s1 + $0x648] sm:$0xff]
      %v1604 = vld [vmem:[%s1 + $0x650] sm:$0xff]
      %v1605 = vld [vmem:[%s1 + $0x658] sm:$0xff]
      %v1606 = vld [vmem:[%s1 + $0x660] sm:$0xff]
      %v1607 = vld [vmem:[%s1 + $0x668] sm:$0xff]
      %v1608 = vld [vmem:[%s1 + $0x670] sm:$0xff]
      %v1609 = vld [vmem:[%s1 + $0x678] sm:$0xff]
      %v1610 = vld [vmem:[%s1 + $0x680] sm:$0xff]
      %v1611 = vld [vmem:[%s1 + $0x688] sm:$0xff]
      %v1612 = vld [vmem:[%s1 + $0x690] sm:$0xff]
      %v1613 = vld [vmem:[%s1 + $0x698] sm:$0xff]
      %v1614 = vld [vmem:[%s1 + $0x6a0] sm:$0xff]
      %v1615 = vld [vmem:[%s1 + $0x6a8] sm:$0xff]
      %v1616 = vld [vmem:[%s1 + $0x6b0] sm:$0xff]
      %v1617 = vld [vmem:[%s1 + $0x6b8] sm:$0xff]
      %v1618 = vld [vmem:[%s1 + $0x6c0] sm:$0xff]
      %v1619 = vld [vmem:[%s1 + $0x6c8] sm:$0xff]
      %v1620 = vld [vmem:[%s1 + $0x6d0] sm:$0xff]
      %v1621 = vld [vmem:[%s1 + $0x6d8] sm:$0xff]
      %v1622 = vld [vmem:[%s1 + $0x6e0] sm:$0xff]
      %v1623 = vld [vmem:[%s1 + $0x6e8] sm:$0xff]
      %v1624 = vld [vmem:[%s1 + $0x6f0] sm:$0xff]
      %v1625 = vld [vmem:[%s1 + $0x6f8] sm:$0xff]
      %v1626 = vld [vmem:[%s1 + $0x700] sm:$0xff]
      %v1627 = vld [vmem:[%s1 + $0x708] sm:$0xff]
      %v1628 = vld [vmem:[%s1 + $0x710] sm:$0xff]
      %v1629 = vld [vmem:[%s1 + $0x718] sm:$0xff]
      %v1630 = vld [vmem:[%s1 + $0x720] sm:$0xff]
      %v1631 = vld [vmem:[%s1 + $0x728] sm:$0xff]
      %v1632 = vld [vmem:[%s1 + $0x730] sm:$0xff]
      %v1633 = vld [vmem:[%s1 + $0x738] sm:$0xff]
      %v1634 = vld [vmem:[%s1 + $0x740] sm:$0xff]
      %v1635 = vld [vmem:[%s1 + $0x748] sm:$0xff]
      %v1636 = vld [vmem:[%s1 + $0x750] sm:$0xff]
      %v1637 = vld [vmem:[%s1 + $0x758] sm:$0xff]
      %v1638 = vld [vmem:[%s1 + $0x760] sm:$0xff]
      %v1639 = vld [vmem:[%s1 + $0x768] sm:$0xff]
      %v1640 = vld [vmem:[%s1 + $0x770] sm:$0xff]
      %v1641 = vld [vmem:[%s1 + $0x778] sm:$0xff]
      %v1642 = vld [vmem:[%s1 + $0x780] sm:$0xff]
      %v1643 = vld [vmem:[%s1 + $0x788] sm:$0xff]
      %v1644 = vld [vmem:[%s1 + $0x790] sm:$0xff]
      %v1645 = vld [vmem:[%s1 + $0x798] sm:$0xff]
      %v1646 = vld [vmem:[%s1 + $0x7a0] sm:$0xff]
      %v1647 = vld [vmem:[%s1 + $0x7a8] sm:$0xff]
      %v1648 = vld [vmem:[%s1 + $0x7b0] sm:$0xff]
      %v1649 = vld [vmem:[%s1 + $0x7b8] sm:$0xff]
      %v1650 = vld [vmem:[%s1 + $0x7c0] sm:$0xff]
      %v1651 = vld [vmem:[%s1 + $0x7c8] sm:$0xff]
      %v1652 = vld [vmem:[%s1 + $0x7d0] sm:$0xff]
      %v1653 = vld [vmem:[%s1 + $0x7d8] sm:$0xff]
      %v1654 = vld [vmem:[%s1 + $0x7e0] sm:$0xff]
      %v1655 = vld [vmem:[%s1 + $0x7e8] sm:$0xff]
      %v1656 = vld [vmem:[%s1 + $0x7f0] sm:$0xff]
      %v1657 = vld [vmem:[%s1 + $0x7f8] sm:$0xff]
      %v1658 = vld [vmem:[%s1 + $0x800] sm:$0xff]
      %v1659 = vld [vmem:[%s1 + $0x808] sm:$0xff]
      %v1660 = vpack.c.bf16 %v1403, %v1402
      %v1661 = vpack.c.bf16 %v1405, %v1404
      %v1662 = vpack.c.bf16 %v1407, %v1406
      %v1663 = vpack.c.bf16 %v1409, %v1408
      %v1664 = vpack.c.bf16 %v1411, %v1410
      %v1665 = vpack.c.bf16 %v1413, %v1412
      %v1666 = vpack.c.bf16 %v1415, %v1414
      %v1667 = vpack.c.bf16 %v1417, %v1416
      %v1668 = vpack.c.bf16 %v1419, %v1418
      %v1669 = vpack.c.bf16 %v1421, %v1420
      %v1670 = vpack.c.bf16 %v1423, %v1422
      %v1671 = vpack.c.bf16 %v1425, %v1424
      %v1672 = vpack.c.bf16 %v1427, %v1426
      %v1673 = vpack.c.bf16 %v1429, %v1428
      %v1674 = vpack.c.bf16 %v1431, %v1430
      %v1675 = vpack.c.bf16 %v1433, %v1432
      %v1676 = vpack.c.bf16 %v1435, %v1434
      %v1677 = vpack.c.bf16 %v1437, %v1436
      %v1678 = vpack.c.bf16 %v1439, %v1438
      %v1679 = vpack.c.bf16 %v1441, %v1440
      %v1680 = vpack.c.bf16 %v1443, %v1442
      %v1681 = vpack.c.bf16 %v1445, %v1444
      %v1682 = vpack.c.bf16 %v1447, %v1446
      %v1683 = vpack.c.bf16 %v1449, %v1448
      %v1684 = vpack.c.bf16 %v1451, %v1450
      %v1685 = vpack.c.bf16 %v1453, %v1452
      %v1686 = vpack.c.bf16 %v1455, %v1454
      %v1687 = vpack.c.bf16 %v1457, %v1456
      %v1688 = vpack.c.bf16 %v1459, %v1458
      %v1689 = vpack.c.bf16 %v1461, %v1460
      %v1690 = vpack.c.bf16 %v1463, %v1462
      %v1691 = vpack.c.bf16 %v1465, %v1464
      %v1692 = vpack.c.bf16 %v1467, %v1466
      %v1693 = vpack.c.bf16 %v1469, %v1468
      %v1694 = vpack.c.bf16 %v1471, %v1470
      %v1695 = vpack.c.bf16 %v1473, %v1472
      %v1696 = vpack.c.bf16 %v1475, %v1474
      %v1697 = vpack.c.bf16 %v1477, %v1476
      %v1698 = vpack.c.bf16 %v1479, %v1478
      %v1699 = vpack.c.bf16 %v1481, %v1480
      %v1700 = vpack.c.bf16 %v1483, %v1482
      %v1701 = vpack.c.bf16 %v1485, %v1484
      %v1702 = vpack.c.bf16 %v1487, %v1486
      %v1703 = vpack.c.bf16 %v1489, %v1488
      %v1704 = vpack.c.bf16 %v1491, %v1490
      %v1705 = vpack.c.bf16 %v1493, %v1492
      %v1706 = vpack.c.bf16 %v1495, %v1494
      %v1707 = vpack.c.bf16 %v1497, %v1496
      %v1708 = vpack.c.bf16 %v1499, %v1498
      %v1709 = vpack.c.bf16 %v1501, %v1500
      %v1710 = vpack.c.bf16 %v1503, %v1502
      %v1711 = vpack.c.bf16 %v1505, %v1504
      %v1712 = vpack.c.bf16 %v1507, %v1506
      %v1713 = vpack.c.bf16 %v1509, %v1508
      %v1714 = vpack.c.bf16 %v1511, %v1510
      %v1715 = vpack.c.bf16 %v1513, %v1512
      %v1716 = vpack.c.bf16 %v1515, %v1514
      %v1717 = vpack.c.bf16 %v1517, %v1516
      %v1718 = vpack.c.bf16 %v1519, %v1518
      %v1719 = vpack.c.bf16 %v1521, %v1520
      %v1720 = vpack.c.bf16 %v1523, %v1522
      %v1721 = vpack.c.bf16 %v1525, %v1524
      %v1722 = vpack.c.bf16 %v1527, %v1526
      %v1723 = vpack.c.bf16 %v1529, %v1528
      %v1724 = vpack.c.bf16 %v1531, %v1530
      %v1725 = vpack.c.bf16 %v1533, %v1532
      %v1726 = vpack.c.bf16 %v1535, %v1534
      %v1727 = vpack.c.bf16 %v1537, %v1536
      %v1728 = vpack.c.bf16 %v1539, %v1538
      %v1729 = vpack.c.bf16 %v1541, %v1540
      %v1730 = vpack.c.bf16 %v1543, %v1542
      %v1731 = vpack.c.bf16 %v1545, %v1544
      %v1732 = vpack.c.bf16 %v1547, %v1546
      %v1733 = vpack.c.bf16 %v1549, %v1548
      %v1734 = vpack.c.bf16 %v1551, %v1550
      %v1735 = vpack.c.bf16 %v1553, %v1552
      %v1736 = vpack.c.bf16 %v1555, %v1554
      %v1737 = vpack.c.bf16 %v1557, %v1556
      %v1738 = vpack.c.bf16 %v1559, %v1558
      %v1739 = vpack.c.bf16 %v1561, %v1560
      %v1740 = vpack.c.bf16 %v1563, %v1562
      %v1741 = vpack.c.bf16 %v1565, %v1564
      %v1742 = vpack.c.bf16 %v1567, %v1566
      %v1743 = vpack.c.bf16 %v1569, %v1568
      %v1744 = vpack.c.bf16 %v1571, %v1570
      %v1745 = vpack.c.bf16 %v1573, %v1572
      %v1746 = vpack.c.bf16 %v1575, %v1574
      %v1747 = vpack.c.bf16 %v1577, %v1576
      %v1748 = vpack.c.bf16 %v1579, %v1578
      %v1749 = vpack.c.bf16 %v1581, %v1580
      %v1750 = vpack.c.bf16 %v1583, %v1582
      %v1751 = vpack.c.bf16 %v1585, %v1584
      %v1752 = vpack.c.bf16 %v1587, %v1586
      %v1753 = vpack.c.bf16 %v1589, %v1588
      %v1754 = vpack.c.bf16 %v1591, %v1590
      %v1755 = vpack.c.bf16 %v1593, %v1592
      %v1756 = vpack.c.bf16 %v1595, %v1594
      %v1757 = vpack.c.bf16 %v1597, %v1596
      %v1758 = vpack.c.bf16 %v1599, %v1598
      %v1759 = vpack.c.bf16 %v1601, %v1600
      %v1760 = vpack.c.bf16 %v1603, %v1602
      %v1761 = vpack.c.bf16 %v1605, %v1604
      %v1762 = vpack.c.bf16 %v1607, %v1606
      %v1763 = vpack.c.bf16 %v1609, %v1608
      %v1764 = vpack.c.bf16 %v1611, %v1610
      %v1765 = vpack.c.bf16 %v1613, %v1612
      %v1766 = vpack.c.bf16 %v1615, %v1614
      %v1767 = vpack.c.bf16 %v1617, %v1616
      %v1768 = vpack.c.bf16 %v1619, %v1618
      %v1769 = vpack.c.bf16 %v1621, %v1620
      %v1770 = vpack.c.bf16 %v1623, %v1622
      %v1771 = vpack.c.bf16 %v1625, %v1624
      %v1772 = vpack.c.bf16 %v1627, %v1626
      %v1773 = vpack.c.bf16 %v1629, %v1628
      %v1774 = vpack.c.bf16 %v1631, %v1630
      %v1775 = vpack.c.bf16 %v1633, %v1632
      %v1776 = vpack.c.bf16 %v1635, %v1634
      %v1777 = vpack.c.bf16 %v1637, %v1636
      %v1778 = vpack.c.bf16 %v1639, %v1638
      %v1779 = vpack.c.bf16 %v1641, %v1640
      %v1780 = vpack.c.bf16 %v1643, %v1642
      %v1781 = vpack.c.bf16 %v1645, %v1644
      %v1782 = vpack.c.bf16 %v1647, %v1646
      %v1783 = vpack.c.bf16 %v1649, %v1648
      %v1784 = vpack.c.bf16 %v1651, %v1650
      %v1785 = vpack.c.bf16 %v1653, %v1652
      %v1786 = vpack.c.bf16 %v1655, %v1654
      %v1787 = vpack.c.bf16 %v1657, %v1656
      %v1788 = vpack.c.bf16 %v1659, %v1658
      %vm1789 = vcmask 130048
      %v1791 = vsel %vm1789, %v1231, 0
      %v1794 = vsel %vm1789, %v1248, 0
      %v1797 = vsel %vm1789, %v1265, 0
      %v1800 = vsel %vm1789, %v1282, 0
      %v1803 = vsel %vm1789, %v1299, 0
      %v1806 = vsel %vm1789, %v1316, 0
      %v1809 = vsel %vm1789, %v1333, 0
      %v1812 = vsel %vm1789, %v1350, 0
      %v1815 = vsel %vm1789, %v1367, 0
      %v1818 = vsel %vm1789, %v1384, 0
      %v1821 = vsel %vm1789, %v1401, 0
      %1823 = vmatprep.subr.bf16.mxu0 0
      %1824 = vmatpush1.bf16.msra.mxu0 %v1667
      %1825 = vmatprep.subr.bf16.mxu0 0
      %1826 = vmatpush1.bf16.msra.mxu0 %v1666
      %1827 = vmatprep.subr.bf16.mxu0 0
      %1828 = vmatpush1.bf16.msra.mxu0 %v1665
      %1829 = vmatprep.subr.bf16.mxu0 0
      %1830 = vmatpush1.bf16.msra.mxu0 %v1664
      %1831 = vmatprep.subr.bf16.mxu0 0
      %1832 = vmatpush1.bf16.msra.mxu0 %v1663
      %1833 = vmatprep.subr.bf16.mxu0 0
      %1834 = vmatpush1.bf16.msra.mxu0 %v1662
      %1835 = vmatprep.subr.bf16.mxu0 0
      %1836 = vmatpush1.bf16.msra.mxu0 %v1661
      %1837 = vmatprep.subr.bf16.mxu0 0
      %1838 = vmatpush1.bf16.msra.mxu0 %v1660
      %1839 = vmatprep.subr.bf16.mxu0 0
      %1840 = vmatpush2.bf16.msra.mxu0 %v1675
      %1841 = vmatprep.subr.bf16.mxu0 0
      %1842 = vmatpush2.bf16.msra.mxu0 %v1674
      %1843 = vmatprep.subr.bf16.mxu0 0
      %1844 = vmatpush2.bf16.msra.mxu0 %v1673
      %1845 = vmatprep.subr.bf16.mxu0 0
      %1846 = vmatpush2.bf16.msra.mxu0 %v1672
      %1847 = vmatprep.subr.bf16.mxu0 0
      %1848 = vmatpush2.bf16.msra.mxu0 %v1671
      %1849 = vmatprep.subr.bf16.mxu0 0
      %1850 = vmatpush2.bf16.msra.mxu0 %v1670
      %1851 = vmatprep.subr.bf16.mxu0 0
      %1852 = vmatpush2.bf16.msra.mxu0 %v1669
      %1853 = vmatprep.subr.bf16.mxu0 0
      %1854 = vmatpush2.bf16.msra.mxu0 %v1668
      %1855 = vmatprep.mubr.bf16.mxu0 %v1216
      %1856 = vmatmul.mubr.bf16.gmra.mxu0 %v1215
      %v1857 = vpop.f32.mrf.mxu0
      %v1858 = vadd.f32 0.0, %v1857
      %v1859 = vpop.f32.mrf.mxu0
      %v1860 = vpop.f32.mrf.mxu0
      %v1861 = vadd.f32 0.0, %v1860
      %v1862 = vpop.f32.mrf.mxu0
      %1863 = vmatprep.mubr.bf16.mxu0 %v1233
      %1864 = vmatmul.mubr.bf16.gmra.mxu0 %v1232
      %v1865 = vpop.f32.mrf.mxu0
      %v1866 = vadd.f32 0.0, %v1865
      %v1867 = vpop.f32.mrf.mxu0
      %v1868 = vpop.f32.mrf.mxu0
      %v1869 = vadd.f32 0.0, %v1868
      %v1870 = vpop.f32.mrf.mxu0
      %1871 = vmatprep.mubr.bf16.mxu0 %v1250
      %1872 = vmatmul.mubr.bf16.gmra.mxu0 %v1249
      %v1873 = vpop.f32.mrf.mxu0
      %v1874 = vadd.f32 0.0, %v1873
      %v1875 = vpop.f32.mrf.mxu0
      %v1876 = vpop.f32.mrf.mxu0
      %v1877 = vadd.f32 0.0, %v1876
      %v1878 = vpop.f32.mrf.mxu0
      %1879 = vmatprep.mubr.bf16.mxu0 %v1267
      %1880 = vmatmul.mubr.bf16.gmra.mxu0 %v1266
      %v1881 = vpop.f32.mrf.mxu0
      %v1882 = vadd.f32 0.0, %v1881
      %v1883 = vpop.f32.mrf.mxu0
      %v1884 = vpop.f32.mrf.mxu0
      %v1885 = vadd.f32 0.0, %v1884
      %v1886 = vpop.f32.mrf.mxu0
      %1887 = vmatprep.mubr.bf16.mxu0 %v1284
      %1888 = vmatmul.mubr.bf16.gmra.mxu0 %v1283
      %v1889 = vpop.f32.mrf.mxu0
      %v1890 = vadd.f32 0.0, %v1889
      %v1891 = vpop.f32.mrf.mxu0
      %v1892 = vpop.f32.mrf.mxu0
      %v1893 = vadd.f32 0.0, %v1892
      %v1894 = vpop.f32.mrf.mxu0
      %1895 = vmatprep.mubr.bf16.mxu0 %v1301
      %1896 = vmatmul.mubr.bf16.gmra.mxu0 %v1300
      %v1897 = vpop.f32.mrf.mxu0
      %v1898 = vadd.f32 0.0, %v1897
      %v1899 = vpop.f32.mrf.mxu0
      %v1900 = vpop.f32.mrf.mxu0
      %v1901 = vadd.f32 0.0, %v1900
      %v1902 = vpop.f32.mrf.mxu0
      %1903 = vmatprep.mubr.bf16.mxu0 %v1318
      %1904 = vmatmul.mubr.bf16.gmra.mxu0 %v1317
      %v1905 = vpop.f32.mrf.mxu0
      %v1906 = vadd.f32 0.0, %v1905
      %v1907 = vpop.f32.mrf.mxu0
      %v1908 = vpop.f32.mrf.mxu0
      %v1909 = vadd.f32 0.0, %v1908
      %v1910 = vpop.f32.mrf.mxu0
      %1911 = vmatprep.mubr.bf16.mxu0 %v1335
      %1912 = vmatmul.mubr.bf16.gmra.mxu0 %v1334
      %v1913 = vpop.f32.mrf.mxu0
      %v1914 = vadd.f32 0.0, %v1913
      %v1915 = vpop.f32.mrf.mxu0
      %v1916 = vpop.f32.mrf.mxu0
      %v1917 = vadd.f32 0.0, %v1916
      %v1918 = vpop.f32.mrf.mxu0
      %1919 = vmatprep.mubr.bf16.mxu0 %v1352
      %1920 = vmatmul.mubr.bf16.gmra.mxu0 %v1351
      %v1921 = vpop.f32.mrf.mxu0
      %v1922 = vadd.f32 0.0, %v1921
      %v1923 = vpop.f32.mrf.mxu0
      %v1924 = vpop.f32.mrf.mxu0
      %v1925 = vadd.f32 0.0, %v1924
      %v1926 = vpop.f32.mrf.mxu0
      %1927 = vmatprep.mubr.bf16.mxu0 %v1369
      %1928 = vmatmul.mubr.bf16.gmra.mxu0 %v1368
      %v1929 = vpop.f32.mrf.mxu0
      %v1930 = vadd.f32 0.0, %v1929
      %v1931 = vpop.f32.mrf.mxu0
      %v1932 = vpop.f32.mrf.mxu0
      %v1933 = vadd.f32 0.0, %v1932
      %v1934 = vpop.f32.mrf.mxu0
      %1935 = vmatprep.mubr.bf16.mxu0 %v1386
      %1936 = vmatmul.mubr.bf16.gmra.mxu0 %v1385
      %v1937 = vpop.f32.mrf.mxu0
      %v1938 = vadd.f32 0.0, %v1937
      %v1939 = vpop.f32.mrf.mxu0
      %v1940 = vpop.f32.mrf.mxu0
      %v1941 = vadd.f32 0.0, %v1940
      %v1942 = vpop.f32.mrf.mxu0
      %1943 = vdwg.mxu0
      %1944 = vmatprep.subr.bf16.mxu0 0
      %1945 = vmatpush1.bf16.msra.mxu0 %v1683
      %1946 = vmatprep.subr.bf16.mxu0 0
      %1947 = vmatpush1.bf16.msra.mxu0 %v1682
      %1948 = vmatprep.subr.bf16.mxu0 0
      %1949 = vmatpush1.bf16.msra.mxu0 %v1681
      %1950 = vmatprep.subr.bf16.mxu0 0
      %1951 = vmatpush1.bf16.msra.mxu0 %v1680
      %1952 = vmatprep.subr.bf16.mxu0 0
      %1953 = vmatpush1.bf16.msra.mxu0 %v1679
      %1954 = vmatprep.subr.bf16.mxu0 0
      %1955 = vmatpush1.bf16.msra.mxu0 %v1678
      %1956 = vmatprep.subr.bf16.mxu0 0
      %1957 = vmatpush1.bf16.msra.mxu0 %v1677
      %1958 = vmatprep.subr.bf16.mxu0 0
      %1959 = vmatpush1.bf16.msra.mxu0 %v1676
      %1960 = vmatprep.subr.bf16.mxu0 0
      %1961 = vmatpush2.bf16.msra.mxu0 %v1691
      %1962 = vmatprep.subr.bf16.mxu0 0
      %1963 = vmatpush2.bf16.msra.mxu0 %v1690
      %1964 = vmatprep.subr.bf16.mxu0 0
      %1965 = vmatpush2.bf16.msra.mxu0 %v1689
      %1966 = vmatprep.subr.bf16.mxu0 0
      %1967 = vmatpush2.bf16.msra.mxu0 %v1688
      %1968 = vmatprep.subr.bf16.mxu0 0
      %1969 = vmatpush2.bf16.msra.mxu0 %v1687
      %1970 = vmatprep.subr.bf16.mxu0 0
      %1971 = vmatpush2.bf16.msra.mxu0 %v1686
      %1972 = vmatprep.subr.bf16.mxu0 0
      %1973 = vmatpush2.bf16.msra.mxu0 %v1685
      %1974 = vmatprep.subr.bf16.mxu0 0
      %1975 = vmatpush2.bf16.msra.mxu0 %v1684
      %1976 = vmatprep.mubr.bf16.mxu0 %v1218
      %1977 = vmatmul.mubr.bf16.gmra.mxu0 %v1217
      %v1978 = vpop.f32.mrf.mxu0
      %v1979 = vadd.f32 %v1858, %v1978
      %v1980 = vpop.f32.mrf.mxu0
      %v1981 = vpop.f32.mrf.mxu0
      %v1982 = vadd.f32 %v1861, %v1981
      %v1983 = vpop.f32.mrf.mxu0
      %1984 = vmatprep.mubr.bf16.mxu0 %v1235
      %1985 = vmatmul.mubr.bf16.gmra.mxu0 %v1234
      %v1986 = vpop.f32.mrf.mxu0
      %v1987 = vadd.f32 %v1866, %v1986
      %v1988 = vpop.f32.mrf.mxu0
      %v1989 = vpop.f32.mrf.mxu0
      %v1990 = vadd.f32 %v1869, %v1989
      %v1991 = vpop.f32.mrf.mxu0
      %1992 = vmatprep.mubr.bf16.mxu0 %v1252
      %1993 = vmatmul.mubr.bf16.gmra.mxu0 %v1251
      %v1994 = vpop.f32.mrf.mxu0
      %v1995 = vadd.f32 %v1874, %v1994
      %v1996 = vpop.f32.mrf.mxu0
      %v1997 = vpop.f32.mrf.mxu0
      %v1998 = vadd.f32 %v1877, %v1997
      %v1999 = vpop.f32.mrf.mxu0
      %2000 = vmatprep.mubr.bf16.mxu0 %v1269
      %2001 = vmatmul.mubr.bf16.gmra.mxu0 %v1268
      %v2002 = vpop.f32.mrf.mxu0
      %v2003 = vadd.f32 %v1882, %v2002
      %v2004 = vpop.f32.mrf.mxu0
      %v2005 = vpop.f32.mrf.mxu0
      %v2006 = vadd.f32 %v1885, %v2005
      %v2007 = vpop.f32.mrf.mxu0
      %2008 = vmatprep.mubr.bf16.mxu0 %v1286
      %2009 = vmatmul.mubr.bf16.gmra.mxu0 %v1285
      %v2010 = vpop.f32.mrf.mxu0
      %v2011 = vadd.f32 %v1890, %v2010
      %v2012 = vpop.f32.mrf.mxu0
      %v2013 = vpop.f32.mrf.mxu0
      %v2014 = vadd.f32 %v1893, %v2013
      %v2015 = vpop.f32.mrf.mxu0
      %2016 = vmatprep.mubr.bf16.mxu0 %v1303
      %2017 = vmatmul.mubr.bf16.gmra.mxu0 %v1302
      %v2018 = vpop.f32.mrf.mxu0
      %v2019 = vadd.f32 %v1898, %v2018
      %v2020 = vpop.f32.mrf.mxu0
      %v2021 = vpop.f32.mrf.mxu0
      %v2022 = vadd.f32 %v1901, %v2021
      %v2023 = vpop.f32.mrf.mxu0
      %2024 = vmatprep.mubr.bf16.mxu0 %v1320
      %2025 = vmatmul.mubr.bf16.gmra.mxu0 %v1319
      %v2026 = vpop.f32.mrf.mxu0
      %v2027 = vadd.f32 %v1906, %v2026
      %v2028 = vpop.f32.mrf.mxu0
      %v2029 = vpop.f32.mrf.mxu0
      %v2030 = vadd.f32 %v1909, %v2029
      %v2031 = vpop.f32.mrf.mxu0
      %2032 = vmatprep.mubr.bf16.mxu0 %v1337
      %2033 = vmatmul.mubr.bf16.gmra.mxu0 %v1336
      %v2034 = vpop.f32.mrf.mxu0
      %v2035 = vadd.f32 %v1914, %v2034
      %v2036 = vpop.f32.mrf.mxu0
      %v2037 = vpop.f32.mrf.mxu0
      %v2038 = vadd.f32 %v1917, %v2037
      %v2039 = vpop.f32.mrf.mxu0
      %2040 = vmatprep.mubr.bf16.mxu0 %v1354
      %2041 = vmatmul.mubr.bf16.gmra.mxu0 %v1353
      %v2042 = vpop.f32.mrf.mxu0
      %v2043 = vadd.f32 %v1922, %v2042
      %v2044 = vpop.f32.mrf.mxu0
      %v2045 = vpop.f32.mrf.mxu0
      %v2046 = vadd.f32 %v1925, %v2045
      %v2047 = vpop.f32.mrf.mxu0
      %2048 = vmatprep.mubr.bf16.mxu0 %v1371
      %2049 = vmatmul.mubr.bf16.gmra.mxu0 %v1370
      %v2050 = vpop.f32.mrf.mxu0
      %v2051 = vadd.f32 %v1930, %v2050
      %v2052 = vpop.f32.mrf.mxu0
      %v2053 = vpop.f32.mrf.mxu0
      %v2054 = vadd.f32 %v1933, %v2053
      %v2055 = vpop.f32.mrf.mxu0
      %2056 = vmatprep.mubr.bf16.mxu0 %v1388
      %2057 = vmatmul.mubr.bf16.gmra.mxu0 %v1387
      %v2058 = vpop.f32.mrf.mxu0
      %v2059 = vadd.f32 %v1938, %v2058
      %v2060 = vpop.f32.mrf.mxu0
      %v2061 = vpop.f32.mrf.mxu0
      %v2062 = vadd.f32 %v1941, %v2061
      %v2063 = vpop.f32.mrf.mxu0
      %2064 = vdwg.mxu0
      %2065 = vmatprep.subr.bf16.mxu0 0
      %2066 = vmatpush1.bf16.msra.mxu0 %v1699
      %2067 = vmatprep.subr.bf16.mxu0 0
      %2068 = vmatpush1.bf16.msra.mxu0 %v1698
      %2069 = vmatprep.subr.bf16.mxu0 0
      %2070 = vmatpush1.bf16.msra.mxu0 %v1697
      %2071 = vmatprep.subr.bf16.mxu0 0
      %2072 = vmatpush1.bf16.msra.mxu0 %v1696
      %2073 = vmatprep.subr.bf16.mxu0 0
      %2074 = vmatpush1.bf16.msra.mxu0 %v1695
      %2075 = vmatprep.subr.bf16.mxu0 0
      %2076 = vmatpush1.bf16.msra.mxu0 %v1694
      %2077 = vmatprep.subr.bf16.mxu0 0
      %2078 = vmatpush1.bf16.msra.mxu0 %v1693
      %2079 = vmatprep.subr.bf16.mxu0 0
      %2080 = vmatpush1.bf16.msra.mxu0 %v1692
      %2081 = vmatprep.subr.bf16.mxu0 0
      %2082 = vmatpush2.bf16.msra.mxu0 %v1707
      %2083 = vmatprep.subr.bf16.mxu0 0
      %2084 = vmatpush2.bf16.msra.mxu0 %v1706
      %2085 = vmatprep.subr.bf16.mxu0 0
      %2086 = vmatpush2.bf16.msra.mxu0 %v1705
      %2087 = vmatprep.subr.bf16.mxu0 0
      %2088 = vmatpush2.bf16.msra.mxu0 %v1704
      %2089 = vmatprep.subr.bf16.mxu0 0
      %2090 = vmatpush2.bf16.msra.mxu0 %v1703
      %2091 = vmatprep.subr.bf16.mxu0 0
      %2092 = vmatpush2.bf16.msra.mxu0 %v1702
      %2093 = vmatprep.subr.bf16.mxu0 0
      %2094 = vmatpush2.bf16.msra.mxu0 %v1701
      %2095 = vmatprep.subr.bf16.mxu0 0
      %2096 = vmatpush2.bf16.msra.mxu0 %v1700
      %2097 = vmatprep.mubr.bf16.mxu0 %v1220
      %2098 = vmatmul.mubr.bf16.gmra.mxu0 %v1219
      %v2099 = vpop.f32.mrf.mxu0
      %v2100 = vadd.f32 %v1979, %v2099
      %v2101 = vpop.f32.mrf.mxu0
      %v2102 = vpop.f32.mrf.mxu0
      %v2103 = vadd.f32 %v1982, %v2102
      %v2104 = vpop.f32.mrf.mxu0
      %2105 = vmatprep.mubr.bf16.mxu0 %v1237
      %2106 = vmatmul.mubr.bf16.gmra.mxu0 %v1236
      %v2107 = vpop.f32.mrf.mxu0
      %v2108 = vadd.f32 %v1987, %v2107
      %v2109 = vpop.f32.mrf.mxu0
      %v2110 = vpop.f32.mrf.mxu0
      %v2111 = vadd.f32 %v1990, %v2110
      %v2112 = vpop.f32.mrf.mxu0
      %2113 = vmatprep.mubr.bf16.mxu0 %v1254
      %2114 = vmatmul.mubr.bf16.gmra.mxu0 %v1253
      %v2115 = vpop.f32.mrf.mxu0
      %v2116 = vadd.f32 %v1995, %v2115
      %v2117 = vpop.f32.mrf.mxu0
      %v2118 = vpop.f32.mrf.mxu0
      %v2119 = vadd.f32 %v1998, %v2118
      %v2120 = vpop.f32.mrf.mxu0
      %2121 = vmatprep.mubr.bf16.mxu0 %v1271
      %2122 = vmatmul.mubr.bf16.gmra.mxu0 %v1270
      %v2123 = vpop.f32.mrf.mxu0
      %v2124 = vadd.f32 %v2003, %v2123
      %v2125 = vpop.f32.mrf.mxu0
      %v2126 = vpop.f32.mrf.mxu0
      %v2127 = vadd.f32 %v2006, %v2126
      %v2128 = vpop.f32.mrf.mxu0
      %2129 = vmatprep.mubr.bf16.mxu0 %v1288
      %2130 = vmatmul.mubr.bf16.gmra.mxu0 %v1287
      %v2131 = vpop.f32.mrf.mxu0
      %v2132 = vadd.f32 %v2011, %v2131
      %v2133 = vpop.f32.mrf.mxu0
      %v2134 = vpop.f32.mrf.mxu0
      %v2135 = vadd.f32 %v2014, %v2134
      %v2136 = vpop.f32.mrf.mxu0
      %2137 = vmatprep.mubr.bf16.mxu0 %v1305
      %2138 = vmatmul.mubr.bf16.gmra.mxu0 %v1304
      %v2139 = vpop.f32.mrf.mxu0
      %v2140 = vadd.f32 %v2019, %v2139
      %v2141 = vpop.f32.mrf.mxu0
      %v2142 = vpop.f32.mrf.mxu0
      %v2143 = vadd.f32 %v2022, %v2142
      %v2144 = vpop.f32.mrf.mxu0
      %2145 = vmatprep.mubr.bf16.mxu0 %v1322
      %2146 = vmatmul.mubr.bf16.gmra.mxu0 %v1321
      %v2147 = vpop.f32.mrf.mxu0
      %v2148 = vadd.f32 %v2027, %v2147
      %v2149 = vpop.f32.mrf.mxu0
      %v2150 = vpop.f32.mrf.mxu0
      %v2151 = vadd.f32 %v2030, %v2150
      %v2152 = vpop.f32.mrf.mxu0
      %2153 = vmatprep.mubr.bf16.mxu0 %v1339
      %2154 = vmatmul.mubr.bf16.gmra.mxu0 %v1338
      %v2155 = vpop.f32.mrf.mxu0
      %v2156 = vadd.f32 %v2035, %v2155
      %v2157 = vpop.f32.mrf.mxu0
      %v2158 = vpop.f32.mrf.mxu0
      %v2159 = vadd.f32 %v2038, %v2158
      %v2160 = vpop.f32.mrf.mxu0
      %2161 = vmatprep.mubr.bf16.mxu0 %v1356
      %2162 = vmatmul.mubr.bf16.gmra.mxu0 %v1355
      %v2163 = vpop.f32.mrf.mxu0
      %v2164 = vadd.f32 %v2043, %v2163
      %v2165 = vpop.f32.mrf.mxu0
      %v2166 = vpop.f32.mrf.mxu0
      %v2167 = vadd.f32 %v2046, %v2166
      %v2168 = vpop.f32.mrf.mxu0
      %2169 = vmatprep.mubr.bf16.mxu0 %v1373
      %2170 = vmatmul.mubr.bf16.gmra.mxu0 %v1372
      %v2171 = vpop.f32.mrf.mxu0
      %v2172 = vadd.f32 %v2051, %v2171
      %v2173 = vpop.f32.mrf.mxu0
      %v2174 = vpop.f32.mrf.mxu0
      %v2175 = vadd.f32 %v2054, %v2174
      %v2176 = vpop.f32.mrf.mxu0
      %2177 = vmatprep.mubr.bf16.mxu0 %v1390
      %2178 = vmatmul.mubr.bf16.gmra.mxu0 %v1389
      %v2179 = vpop.f32.mrf.mxu0
      %v2180 = vadd.f32 %v2059, %v2179
      %v2181 = vpop.f32.mrf.mxu0
      %v2182 = vpop.f32.mrf.mxu0
      %v2183 = vadd.f32 %v2062, %v2182
      %v2184 = vpop.f32.mrf.mxu0
      %2185 = vdwg.mxu0
      %2186 = vmatprep.subr.bf16.mxu0 0
      %2187 = vmatpush1.bf16.msra.mxu0 %v1715
      %2188 = vmatprep.subr.bf16.mxu0 0
      %2189 = vmatpush1.bf16.msra.mxu0 %v1714
      %2190 = vmatprep.subr.bf16.mxu0 0
      %2191 = vmatpush1.bf16.msra.mxu0 %v1713
      %2192 = vmatprep.subr.bf16.mxu0 0
      %2193 = vmatpush1.bf16.msra.mxu0 %v1712
      %2194 = vmatprep.subr.bf16.mxu0 0
      %2195 = vmatpush1.bf16.msra.mxu0 %v1711
      %2196 = vmatprep.subr.bf16.mxu0 0
      %2197 = vmatpush1.bf16.msra.mxu0 %v1710
      %2198 = vmatprep.subr.bf16.mxu0 0
      %2199 = vmatpush1.bf16.msra.mxu0 %v1709
      %2200 = vmatprep.subr.bf16.mxu0 0
      %2201 = vmatpush1.bf16.msra.mxu0 %v1708
      %2202 = vmatprep.subr.bf16.mxu0 0
      %2203 = vmatpush2.bf16.msra.mxu0 %v1723
      %2204 = vmatprep.subr.bf16.mxu0 0
      %2205 = vmatpush2.bf16.msra.mxu0 %v1722
      %2206 = vmatprep.subr.bf16.mxu0 0
      %2207 = vmatpush2.bf16.msra.mxu0 %v1721
      %2208 = vmatprep.subr.bf16.mxu0 0
      %2209 = vmatpush2.bf16.msra.mxu0 %v1720
      %2210 = vmatprep.subr.bf16.mxu0 0
      %2211 = vmatpush2.bf16.msra.mxu0 %v1719
      %2212 = vmatprep.subr.bf16.mxu0 0
      %2213 = vmatpush2.bf16.msra.mxu0 %v1718
      %2214 = vmatprep.subr.bf16.mxu0 0
      %2215 = vmatpush2.bf16.msra.mxu0 %v1717
      %2216 = vmatprep.subr.bf16.mxu0 0
      %2217 = vmatpush2.bf16.msra.mxu0 %v1716
      %2218 = vmatprep.mubr.bf16.mxu0 %v1222
      %2219 = vmatmul.mubr.bf16.gmra.mxu0 %v1221
      %v2220 = vpop.f32.mrf.mxu0
      %v2221 = vadd.f32 %v2100, %v2220
      %v2222 = vpop.f32.mrf.mxu0
      %v2223 = vpop.f32.mrf.mxu0
      %v2224 = vadd.f32 %v2103, %v2223
      %v2225 = vpop.f32.mrf.mxu0
      %2226 = vmatprep.mubr.bf16.mxu0 %v1239
      %2227 = vmatmul.mubr.bf16.gmra.mxu0 %v1238
      %v2228 = vpop.f32.mrf.mxu0
      %v2229 = vadd.f32 %v2108, %v2228
      %v2230 = vpop.f32.mrf.mxu0
      %v2231 = vpop.f32.mrf.mxu0
      %v2232 = vadd.f32 %v2111, %v2231
      %v2233 = vpop.f32.mrf.mxu0
      %2234 = vmatprep.mubr.bf16.mxu0 %v1256
      %2235 = vmatmul.mubr.bf16.gmra.mxu0 %v1255
      %v2236 = vpop.f32.mrf.mxu0
      %v2237 = vadd.f32 %v2116, %v2236
      %v2238 = vpop.f32.mrf.mxu0
      %v2239 = vpop.f32.mrf.mxu0
      %v2240 = vadd.f32 %v2119, %v2239
      %v2241 = vpop.f32.mrf.mxu0
      %2242 = vmatprep.mubr.bf16.mxu0 %v1273
      %2243 = vmatmul.mubr.bf16.gmra.mxu0 %v1272
      %v2244 = vpop.f32.mrf.mxu0
      %v2245 = vadd.f32 %v2124, %v2244
      %v2246 = vpop.f32.mrf.mxu0
      %v2247 = vpop.f32.mrf.mxu0
      %v2248 = vadd.f32 %v2127, %v2247
      %v2249 = vpop.f32.mrf.mxu0
      %2250 = vmatprep.mubr.bf16.mxu0 %v1290
      %2251 = vmatmul.mubr.bf16.gmra.mxu0 %v1289
      %v2252 = vpop.f32.mrf.mxu0
      %v2253 = vadd.f32 %v2132, %v2252
      %v2254 = vpop.f32.mrf.mxu0
      %v2255 = vpop.f32.mrf.mxu0
      %v2256 = vadd.f32 %v2135, %v2255
      %v2257 = vpop.f32.mrf.mxu0
      %2258 = vmatprep.mubr.bf16.mxu0 %v1307
      %2259 = vmatmul.mubr.bf16.gmra.mxu0 %v1306
      %v2260 = vpop.f32.mrf.mxu0
      %v2261 = vadd.f32 %v2140, %v2260
      %v2262 = vpop.f32.mrf.mxu0
      %v2263 = vpop.f32.mrf.mxu0
      %v2264 = vadd.f32 %v2143, %v2263
      %v2265 = vpop.f32.mrf.mxu0
      %2266 = vmatprep.mubr.bf16.mxu0 %v1324
      %2267 = vmatmul.mubr.bf16.gmra.mxu0 %v1323
      %v2268 = vpop.f32.mrf.mxu0
      %v2269 = vadd.f32 %v2148, %v2268
      %v2270 = vpop.f32.mrf.mxu0
      %v2271 = vpop.f32.mrf.mxu0
      %v2272 = vadd.f32 %v2151, %v2271
      %v2273 = vpop.f32.mrf.mxu0
      %2274 = vmatprep.mubr.bf16.mxu0 %v1341
      %2275 = vmatmul.mubr.bf16.gmra.mxu0 %v1340
      %v2276 = vpop.f32.mrf.mxu0
      %v2277 = vadd.f32 %v2156, %v2276
      %v2278 = vpop.f32.mrf.mxu0
      %v2279 = vpop.f32.mrf.mxu0
      %v2280 = vadd.f32 %v2159, %v2279
      %v2281 = vpop.f32.mrf.mxu0
      %2282 = vmatprep.mubr.bf16.mxu0 %v1358
      %2283 = vmatmul.mubr.bf16.gmra.mxu0 %v1357
      %v2284 = vpop.f32.mrf.mxu0
      %v2285 = vadd.f32 %v2164, %v2284
      %v2286 = vpop.f32.mrf.mxu0
      %v2287 = vpop.f32.mrf.mxu0
      %v2288 = vadd.f32 %v2167, %v2287
      %v2289 = vpop.f32.mrf.mxu0
      %2290 = vmatprep.mubr.bf16.mxu0 %v1375
      %2291 = vmatmul.mubr.bf16.gmra.mxu0 %v1374
      %v2292 = vpop.f32.mrf.mxu0
      %v2293 = vadd.f32 %v2172, %v2292
      %v2294 = vpop.f32.mrf.mxu0
      %v2295 = vpop.f32.mrf.mxu0
      %v2296 = vadd.f32 %v2175, %v2295
      %v2297 = vpop.f32.mrf.mxu0
      %2298 = vmatprep.mubr.bf16.mxu0 %v1392
      %2299 = vmatmul.mubr.bf16.gmra.mxu0 %v1391
      %v2300 = vpop.f32.mrf.mxu0
      %v2301 = vadd.f32 %v2180, %v2300
      %v2302 = vpop.f32.mrf.mxu0
      %v2303 = vpop.f32.mrf.mxu0
      %v2304 = vadd.f32 %v2183, %v2303
      %v2305 = vpop.f32.mrf.mxu0
      %2306 = vdwg.mxu0
      %2307 = vmatprep.subr.bf16.mxu0 0
      %2308 = vmatpush1.bf16.msra.mxu0 %v1731
      %2309 = vmatprep.subr.bf16.mxu0 0
      %2310 = vmatpush1.bf16.msra.mxu0 %v1730
      %2311 = vmatprep.subr.bf16.mxu0 0
      %2312 = vmatpush1.bf16.msra.mxu0 %v1729
      %2313 = vmatprep.subr.bf16.mxu0 0
      %2314 = vmatpush1.bf16.msra.mxu0 %v1728
      %2315 = vmatprep.subr.bf16.mxu0 0
      %2316 = vmatpush1.bf16.msra.mxu0 %v1727
      %2317 = vmatprep.subr.bf16.mxu0 0
      %2318 = vmatpush1.bf16.msra.mxu0 %v1726
      %2319 = vmatprep.subr.bf16.mxu0 0
      %2320 = vmatpush1.bf16.msra.mxu0 %v1725
      %2321 = vmatprep.subr.bf16.mxu0 0
      %2322 = vmatpush1.bf16.msra.mxu0 %v1724
      %2323 = vmatprep.subr.bf16.mxu0 0
      %2324 = vmatpush2.bf16.msra.mxu0 %v1739
      %2325 = vmatprep.subr.bf16.mxu0 0
      %2326 = vmatpush2.bf16.msra.mxu0 %v1738
      %2327 = vmatprep.subr.bf16.mxu0 0
      %2328 = vmatpush2.bf16.msra.mxu0 %v1737
      %2329 = vmatprep.subr.bf16.mxu0 0
      %2330 = vmatpush2.bf16.msra.mxu0 %v1736
      %2331 = vmatprep.subr.bf16.mxu0 0
      %2332 = vmatpush2.bf16.msra.mxu0 %v1735
      %2333 = vmatprep.subr.bf16.mxu0 0
      %2334 = vmatpush2.bf16.msra.mxu0 %v1734
      %2335 = vmatprep.subr.bf16.mxu0 0
      %2336 = vmatpush2.bf16.msra.mxu0 %v1733
      %2337 = vmatprep.subr.bf16.mxu0 0
      %2338 = vmatpush2.bf16.msra.mxu0 %v1732
      %2339 = vmatprep.mubr.bf16.mxu0 %v1224
      %2340 = vmatmul.mubr.bf16.gmra.mxu0 %v1223
      %v2341 = vpop.f32.mrf.mxu0
      %v2342 = vadd.f32 %v2221, %v2341
      %v2343 = vpop.f32.mrf.mxu0
      %v2344 = vpop.f32.mrf.mxu0
      %v2345 = vadd.f32 %v2224, %v2344
      %v2346 = vpop.f32.mrf.mxu0
      %2347 = vmatprep.mubr.bf16.mxu0 %v1241
      %2348 = vmatmul.mubr.bf16.gmra.mxu0 %v1240
      %v2349 = vpop.f32.mrf.mxu0
      %v2350 = vadd.f32 %v2229, %v2349
      %v2351 = vpop.f32.mrf.mxu0
      %v2352 = vpop.f32.mrf.mxu0
      %v2353 = vadd.f32 %v2232, %v2352
      %v2354 = vpop.f32.mrf.mxu0
      %2355 = vmatprep.mubr.bf16.mxu0 %v1258
      %2356 = vmatmul.mubr.bf16.gmra.mxu0 %v1257
      %v2357 = vpop.f32.mrf.mxu0
      %v2358 = vadd.f32 %v2237, %v2357
      %v2359 = vpop.f32.mrf.mxu0
      %v2360 = vpop.f32.mrf.mxu0
      %v2361 = vadd.f32 %v2240, %v2360
      %v2362 = vpop.f32.mrf.mxu0
      %2363 = vmatprep.mubr.bf16.mxu0 %v1275
      %2364 = vmatmul.mubr.bf16.gmra.mxu0 %v1274
      %v2365 = vpop.f32.mrf.mxu0
      %v2366 = vadd.f32 %v2245, %v2365
      %v2367 = vpop.f32.mrf.mxu0
      %v2368 = vpop.f32.mrf.mxu0
      %v2369 = vadd.f32 %v2248, %v2368
      %v2370 = vpop.f32.mrf.mxu0
      %2371 = vmatprep.mubr.bf16.mxu0 %v1292
      %2372 = vmatmul.mubr.bf16.gmra.mxu0 %v1291
      %v2373 = vpop.f32.mrf.mxu0
      %v2374 = vadd.f32 %v2253, %v2373
      %v2375 = vpop.f32.mrf.mxu0
      %v2376 = vpop.f32.mrf.mxu0
      %v2377 = vadd.f32 %v2256, %v2376
      %v2378 = vpop.f32.mrf.mxu0
      %2379 = vmatprep.mubr.bf16.mxu0 %v1309
      %2380 = vmatmul.mubr.bf16.gmra.mxu0 %v1308
      %v2381 = vpop.f32.mrf.mxu0
      %v2382 = vadd.f32 %v2261, %v2381
      %v2383 = vpop.f32.mrf.mxu0
      %v2384 = vpop.f32.mrf.mxu0
      %v2385 = vadd.f32 %v2264, %v2384
      %v2386 = vpop.f32.mrf.mxu0
      %2387 = vmatprep.mubr.bf16.mxu0 %v1326
      %2388 = vmatmul.mubr.bf16.gmra.mxu0 %v1325
      %v2389 = vpop.f32.mrf.mxu0
      %v2390 = vadd.f32 %v2269, %v2389
      %v2391 = vpop.f32.mrf.mxu0
      %v2392 = vpop.f32.mrf.mxu0
      %v2393 = vadd.f32 %v2272, %v2392
      %v2394 = vpop.f32.mrf.mxu0
      %2395 = vmatprep.mubr.bf16.mxu0 %v1343
      %2396 = vmatmul.mubr.bf16.gmra.mxu0 %v1342
      %v2397 = vpop.f32.mrf.mxu0
      %v2398 = vadd.f32 %v2277, %v2397
      %v2399 = vpop.f32.mrf.mxu0
      %v2400 = vpop.f32.mrf.mxu0
      %v2401 = vadd.f32 %v2280, %v2400
      %v2402 = vpop.f32.mrf.mxu0
      %2403 = vmatprep.mubr.bf16.mxu0 %v1360
      %2404 = vmatmul.mubr.bf16.gmra.mxu0 %v1359
      %v2405 = vpop.f32.mrf.mxu0
      %v2406 = vadd.f32 %v2285, %v2405
      %v2407 = vpop.f32.mrf.mxu0
      %v2408 = vpop.f32.mrf.mxu0
      %v2409 = vadd.f32 %v2288, %v2408
      %v2410 = vpop.f32.mrf.mxu0
      %2411 = vmatprep.mubr.bf16.mxu0 %v1377
      %2412 = vmatmul.mubr.bf16.gmra.mxu0 %v1376
      %v2413 = vpop.f32.mrf.mxu0
      %v2414 = vadd.f32 %v2293, %v2413
      %v2415 = vpop.f32.mrf.mxu0
      %v2416 = vpop.f32.mrf.mxu0
      %v2417 = vadd.f32 %v2296, %v2416
      %v2418 = vpop.f32.mrf.mxu0
      %2419 = vmatprep.mubr.bf16.mxu0 %v1394
      %2420 = vmatmul.mubr.bf16.gmra.mxu0 %v1393
      %v2421 = vpop.f32.mrf.mxu0
      %v2422 = vadd.f32 %v2301, %v2421
      %v2423 = vpop.f32.mrf.mxu0
      %v2424 = vpop.f32.mrf.mxu0
      %v2425 = vadd.f32 %v2304, %v2424
      %v2426 = vpop.f32.mrf.mxu0
      %2427 = vdwg.mxu0
      %2428 = vmatprep.subr.bf16.mxu0 0
      %2429 = vmatpush1.bf16.msra.mxu0 %v1747
      %2430 = vmatprep.subr.bf16.mxu0 0
      %2431 = vmatpush1.bf16.msra.mxu0 %v1746
      %2432 = vmatprep.subr.bf16.mxu0 0
      %2433 = vmatpush1.bf16.msra.mxu0 %v1745
      %2434 = vmatprep.subr.bf16.mxu0 0
      %2435 = vmatpush1.bf16.msra.mxu0 %v1744
      %2436 = vmatprep.subr.bf16.mxu0 0
      %2437 = vmatpush1.bf16.msra.mxu0 %v1743
      %2438 = vmatprep.subr.bf16.mxu0 0
      %2439 = vmatpush1.bf16.msra.mxu0 %v1742
      %2440 = vmatprep.subr.bf16.mxu0 0
      %2441 = vmatpush1.bf16.msra.mxu0 %v1741
      %2442 = vmatprep.subr.bf16.mxu0 0
      %2443 = vmatpush1.bf16.msra.mxu0 %v1740
      %2444 = vmatprep.subr.bf16.mxu0 0
      %2445 = vmatpush2.bf16.msra.mxu0 %v1755
      %2446 = vmatprep.subr.bf16.mxu0 0
      %2447 = vmatpush2.bf16.msra.mxu0 %v1754
      %2448 = vmatprep.subr.bf16.mxu0 0
      %2449 = vmatpush2.bf16.msra.mxu0 %v1753
      %2450 = vmatprep.subr.bf16.mxu0 0
      %2451 = vmatpush2.bf16.msra.mxu0 %v1752
      %2452 = vmatprep.subr.bf16.mxu0 0
      %2453 = vmatpush2.bf16.msra.mxu0 %v1751
      %2454 = vmatprep.subr.bf16.mxu0 0
      %2455 = vmatpush2.bf16.msra.mxu0 %v1750
      %2456 = vmatprep.subr.bf16.mxu0 0
      %2457 = vmatpush2.bf16.msra.mxu0 %v1749
      %2458 = vmatprep.subr.bf16.mxu0 0
      %2459 = vmatpush2.bf16.msra.mxu0 %v1748
      %2460 = vmatprep.mubr.bf16.mxu0 %v1226
      %2461 = vmatmul.mubr.bf16.gmra.mxu0 %v1225
      %v2462 = vpop.f32.mrf.mxu0
      %v2463 = vadd.f32 %v2342, %v2462
      %v2464 = vpop.f32.mrf.mxu0
      %v2465 = vpop.f32.mrf.mxu0
      %v2466 = vadd.f32 %v2345, %v2465
      %v2467 = vpop.f32.mrf.mxu0
      %2468 = vmatprep.mubr.bf16.mxu0 %v1243
      %2469 = vmatmul.mubr.bf16.gmra.mxu0 %v1242
      %v2470 = vpop.f32.mrf.mxu0
      %v2471 = vadd.f32 %v2350, %v2470
      %v2472 = vpop.f32.mrf.mxu0
      %v2473 = vpop.f32.mrf.mxu0
      %v2474 = vadd.f32 %v2353, %v2473
      %v2475 = vpop.f32.mrf.mxu0
      %2476 = vmatprep.mubr.bf16.mxu0 %v1260
      %2477 = vmatmul.mubr.bf16.gmra.mxu0 %v1259
      %v2478 = vpop.f32.mrf.mxu0
      %v2479 = vadd.f32 %v2358, %v2478
      %v2480 = vpop.f32.mrf.mxu0
      %v2481 = vpop.f32.mrf.mxu0
      %v2482 = vadd.f32 %v2361, %v2481
      %v2483 = vpop.f32.mrf.mxu0
      %2484 = vmatprep.mubr.bf16.mxu0 %v1277
      %2485 = vmatmul.mubr.bf16.gmra.mxu0 %v1276
      %v2486 = vpop.f32.mrf.mxu0
      %v2487 = vadd.f32 %v2366, %v2486
      %v2488 = vpop.f32.mrf.mxu0
      %v2489 = vpop.f32.mrf.mxu0
      %v2490 = vadd.f32 %v2369, %v2489
      %v2491 = vpop.f32.mrf.mxu0
      %2492 = vmatprep.mubr.bf16.mxu0 %v1294
      %2493 = vmatmul.mubr.bf16.gmra.mxu0 %v1293
      %v2494 = vpop.f32.mrf.mxu0
      %v2495 = vadd.f32 %v2374, %v2494
      %v2496 = vpop.f32.mrf.mxu0
      %v2497 = vpop.f32.mrf.mxu0
      %v2498 = vadd.f32 %v2377, %v2497
      %v2499 = vpop.f32.mrf.mxu0
      %2500 = vmatprep.mubr.bf16.mxu0 %v1311
      %2501 = vmatmul.mubr.bf16.gmra.mxu0 %v1310
      %v2502 = vpop.f32.mrf.mxu0
      %v2503 = vadd.f32 %v2382, %v2502
      %v2504 = vpop.f32.mrf.mxu0
      %v2505 = vpop.f32.mrf.mxu0
      %v2506 = vadd.f32 %v2385, %v2505
      %v2507 = vpop.f32.mrf.mxu0
      %2508 = vmatprep.mubr.bf16.mxu0 %v1328
      %2509 = vmatmul.mubr.bf16.gmra.mxu0 %v1327
      %v2510 = vpop.f32.mrf.mxu0
      %v2511 = vadd.f32 %v2390, %v2510
      %v2512 = vpop.f32.mrf.mxu0
      %v2513 = vpop.f32.mrf.mxu0
      %v2514 = vadd.f32 %v2393, %v2513
      %v2515 = vpop.f32.mrf.mxu0
      %2516 = vmatprep.mubr.bf16.mxu0 %v1345
      %2517 = vmatmul.mubr.bf16.gmra.mxu0 %v1344
      %v2518 = vpop.f32.mrf.mxu0
      %v2519 = vadd.f32 %v2398, %v2518
      %v2520 = vpop.f32.mrf.mxu0
      %v2521 = vpop.f32.mrf.mxu0
      %v2522 = vadd.f32 %v2401, %v2521
      %v2523 = vpop.f32.mrf.mxu0
      %2524 = vmatprep.mubr.bf16.mxu0 %v1362
      %2525 = vmatmul.mubr.bf16.gmra.mxu0 %v1361
      %v2526 = vpop.f32.mrf.mxu0
      %v2527 = vadd.f32 %v2406, %v2526
      %v2528 = vpop.f32.mrf.mxu0
      %v2529 = vpop.f32.mrf.mxu0
      %v2530 = vadd.f32 %v2409, %v2529
      %v2531 = vpop.f32.mrf.mxu0
      %2532 = vmatprep.mubr.bf16.mxu0 %v1379
      %2533 = vmatmul.mubr.bf16.gmra.mxu0 %v1378
      %v2534 = vpop.f32.mrf.mxu0
      %v2535 = vadd.f32 %v2414, %v2534
      %v2536 = vpop.f32.mrf.mxu0
      %v2537 = vpop.f32.mrf.mxu0
      %v2538 = vadd.f32 %v2417, %v2537
      %v2539 = vpop.f32.mrf.mxu0
      %2540 = vmatprep.mubr.bf16.mxu0 %v1396
      %2541 = vmatmul.mubr.bf16.gmra.mxu0 %v1395
      %v2542 = vpop.f32.mrf.mxu0
      %v2543 = vadd.f32 %v2422, %v2542
      %v2544 = vpop.f32.mrf.mxu0
      %v2545 = vpop.f32.mrf.mxu0
      %v2546 = vadd.f32 %v2425, %v2545
      %v2547 = vpop.f32.mrf.mxu0
      %2548 = vdwg.mxu0
      %2549 = vmatprep.subr.bf16.mxu0 0
      %2550 = vmatpush1.bf16.msra.mxu0 %v1763
      %2551 = vmatprep.subr.bf16.mxu0 0
      %2552 = vmatpush1.bf16.msra.mxu0 %v1762
      %2553 = vmatprep.subr.bf16.mxu0 0
      %2554 = vmatpush1.bf16.msra.mxu0 %v1761
      %2555 = vmatprep.subr.bf16.mxu0 0
      %2556 = vmatpush1.bf16.msra.mxu0 %v1760
      %2557 = vmatprep.subr.bf16.mxu0 0
      %2558 = vmatpush1.bf16.msra.mxu0 %v1759
      %2559 = vmatprep.subr.bf16.mxu0 0
      %2560 = vmatpush1.bf16.msra.mxu0 %v1758
      %2561 = vmatprep.subr.bf16.mxu0 0
      %2562 = vmatpush1.bf16.msra.mxu0 %v1757
      %2563 = vmatprep.subr.bf16.mxu0 0
      %2564 = vmatpush1.bf16.msra.mxu0 %v1756
      %2565 = vmatprep.subr.bf16.mxu0 0
      %2566 = vmatpush2.bf16.msra.mxu0 %v1771
      %2567 = vmatprep.subr.bf16.mxu0 0
      %2568 = vmatpush2.bf16.msra.mxu0 %v1770
      %2569 = vmatprep.subr.bf16.mxu0 0
      %2570 = vmatpush2.bf16.msra.mxu0 %v1769
      %2571 = vmatprep.subr.bf16.mxu0 0
      %2572 = vmatpush2.bf16.msra.mxu0 %v1768
      %2573 = vmatprep.subr.bf16.mxu0 0
      %2574 = vmatpush2.bf16.msra.mxu0 %v1767
      %2575 = vmatprep.subr.bf16.mxu0 0
      %2576 = vmatpush2.bf16.msra.mxu0 %v1766
      %2577 = vmatprep.subr.bf16.mxu0 0
      %2578 = vmatpush2.bf16.msra.mxu0 %v1765
      %2579 = vmatprep.subr.bf16.mxu0 0
      %2580 = vmatpush2.bf16.msra.mxu0 %v1764
      %2581 = vmatprep.mubr.bf16.mxu0 %v1228
      %2582 = vmatmul.mubr.bf16.gmra.mxu0 %v1227
      %v2583 = vpop.f32.mrf.mxu0
      %v2584 = vadd.f32 %v2463, %v2583
      %v2585 = vpop.f32.mrf.mxu0
      %v2586 = vpop.f32.mrf.mxu0
      %v2587 = vadd.f32 %v2466, %v2586
      %v2588 = vpop.f32.mrf.mxu0
      %2589 = vmatprep.mubr.bf16.mxu0 %v1245
      %2590 = vmatmul.mubr.bf16.gmra.mxu0 %v1244
      %v2591 = vpop.f32.mrf.mxu0
      %v2592 = vadd.f32 %v2471, %v2591
      %v2593 = vpop.f32.mrf.mxu0
      %v2594 = vpop.f32.mrf.mxu0
      %v2595 = vadd.f32 %v2474, %v2594
      %v2596 = vpop.f32.mrf.mxu0
      %2597 = vmatprep.mubr.bf16.mxu0 %v1262
      %2598 = vmatmul.mubr.bf16.gmra.mxu0 %v1261
      %v2599 = vpop.f32.mrf.mxu0
      %v2600 = vadd.f32 %v2479, %v2599
      %v2601 = vpop.f32.mrf.mxu0
      %v2602 = vpop.f32.mrf.mxu0
      %v2603 = vadd.f32 %v2482, %v2602
      %v2604 = vpop.f32.mrf.mxu0
      %2605 = vmatprep.mubr.bf16.mxu0 %v1279
      %2606 = vmatmul.mubr.bf16.gmra.mxu0 %v1278
      %v2607 = vpop.f32.mrf.mxu0
      %v2608 = vadd.f32 %v2487, %v2607
      %v2609 = vpop.f32.mrf.mxu0
      %v2610 = vpop.f32.mrf.mxu0
      %v2611 = vadd.f32 %v2490, %v2610
      %v2612 = vpop.f32.mrf.mxu0
      %2613 = vmatprep.mubr.bf16.mxu0 %v1296
      %2614 = vmatmul.mubr.bf16.gmra.mxu0 %v1295
      %v2615 = vpop.f32.mrf.mxu0
      %v2616 = vadd.f32 %v2495, %v2615
      %v2617 = vpop.f32.mrf.mxu0
      %v2618 = vpop.f32.mrf.mxu0
      %v2619 = vadd.f32 %v2498, %v2618
      %v2620 = vpop.f32.mrf.mxu0
      %2621 = vmatprep.mubr.bf16.mxu0 %v1313
      %2622 = vmatmul.mubr.bf16.gmra.mxu0 %v1312
      %v2623 = vpop.f32.mrf.mxu0
      %v2624 = vadd.f32 %v2503, %v2623
      %v2625 = vpop.f32.mrf.mxu0
      %v2626 = vpop.f32.mrf.mxu0
      %v2627 = vadd.f32 %v2506, %v2626
      %v2628 = vpop.f32.mrf.mxu0
      %2629 = vmatprep.mubr.bf16.mxu0 %v1330
      %2630 = vmatmul.mubr.bf16.gmra.mxu0 %v1329
      %v2631 = vpop.f32.mrf.mxu0
      %v2632 = vadd.f32 %v2511, %v2631
      %v2633 = vpop.f32.mrf.mxu0
      %v2634 = vpop.f32.mrf.mxu0
      %v2635 = vadd.f32 %v2514, %v2634
      %v2636 = vpop.f32.mrf.mxu0
      %2637 = vmatprep.mubr.bf16.mxu0 %v1347
      %2638 = vmatmul.mubr.bf16.gmra.mxu0 %v1346
      %v2639 = vpop.f32.mrf.mxu0
      %v2640 = vadd.f32 %v2519, %v2639
      %v2641 = vpop.f32.mrf.mxu0
      %v2642 = vpop.f32.mrf.mxu0
      %v2643 = vadd.f32 %v2522, %v2642
      %v2644 = vpop.f32.mrf.mxu0
      %2645 = vmatprep.mubr.bf16.mxu0 %v1364
      %2646 = vmatmul.mubr.bf16.gmra.mxu0 %v1363
      %v2647 = vpop.f32.mrf.mxu0
      %v2648 = vadd.f32 %v2527, %v2647
      %v2649 = vpop.f32.mrf.mxu0
      %v2650 = vpop.f32.mrf.mxu0
      %v2651 = vadd.f32 %v2530, %v2650
      %v2652 = vpop.f32.mrf.mxu0
      %2653 = vmatprep.mubr.bf16.mxu0 %v1381
      %2654 = vmatmul.mubr.bf16.gmra.mxu0 %v1380
      %v2655 = vpop.f32.mrf.mxu0
      %v2656 = vadd.f32 %v2535, %v2655
      %v2657 = vpop.f32.mrf.mxu0
      %v2658 = vpop.f32.mrf.mxu0
      %v2659 = vadd.f32 %v2538, %v2658
      %v2660 = vpop.f32.mrf.mxu0
      %2661 = vmatprep.mubr.bf16.mxu0 %v1398
      %2662 = vmatmul.mubr.bf16.gmra.mxu0 %v1397
      %v2663 = vpop.f32.mrf.mxu0
      %v2664 = vadd.f32 %v2543, %v2663
      %v2665 = vpop.f32.mrf.mxu0
      %v2666 = vpop.f32.mrf.mxu0
      %v2667 = vadd.f32 %v2546, %v2666
      %v2668 = vpop.f32.mrf.mxu0
      %2669 = vdwg.mxu0
      %2670 = vmatprep.subr.bf16.mxu0 0
      %2671 = vmatpush1.bf16.msra.mxu0 %v1779
      %2672 = vmatprep.subr.bf16.mxu0 0
      %2673 = vmatpush1.bf16.msra.mxu0 %v1778
      %2674 = vmatprep.subr.bf16.mxu0 0
      %2675 = vmatpush1.bf16.msra.mxu0 %v1777
      %2676 = vmatprep.subr.bf16.mxu0 0
      %2677 = vmatpush1.bf16.msra.mxu0 %v1776
      %2678 = vmatprep.subr.bf16.mxu0 0
      %2679 = vmatpush1.bf16.msra.mxu0 %v1775
      %2680 = vmatprep.subr.bf16.mxu0 0
      %2681 = vmatpush1.bf16.msra.mxu0 %v1774
      %2682 = vmatprep.subr.bf16.mxu0 0
      %2683 = vmatpush1.bf16.msra.mxu0 %v1773
      %2684 = vmatprep.subr.bf16.mxu0 0
      %2685 = vmatpush1.bf16.msra.mxu0 %v1772
      %2686 = vmatprep.subr.bf16.mxu0 0
      %2687 = vmatpush2.bf16.msra.mxu0 %v1787
      %2688 = vmatprep.subr.bf16.mxu0 0
      %2689 = vmatpush2.bf16.msra.mxu0 %v1786
      %2690 = vmatprep.subr.bf16.mxu0 0
      %2691 = vmatpush2.bf16.msra.mxu0 %v1785
      %2692 = vmatprep.subr.bf16.mxu0 0
      %2693 = vmatpush2.bf16.msra.mxu0 %v1784
      %2694 = vmatprep.subr.bf16.mxu0 0
      %2695 = vmatpush2.bf16.msra.mxu0 %v1783
      %2696 = vmatprep.subr.bf16.mxu0 0
      %2697 = vmatpush2.bf16.msra.mxu0 %v1782
      %2698 = vmatprep.subr.bf16.mxu0 0
      %2699 = vmatpush2.bf16.msra.mxu0 %v1781
      %2700 = vmatprep.subr.bf16.mxu0 0
      %2701 = vmatpush2.bf16.msra.mxu0 %v1780
      %2702 = vmatprep.mubr.bf16.mxu0 %v1230
      %2703 = vmatmul.mubr.bf16.gmra.mxu0 %v1229
      %v2704 = vpop.f32.mrf.mxu0
      %v2705 = vadd.f32 %v2584, %v2704
      %v2706 = vpop.f32.mrf.mxu0
      %v2707 = vpop.f32.mrf.mxu0
      %v2708 = vadd.f32 %v2587, %v2707
      %v2709 = vpop.f32.mrf.mxu0
      %2710 = vmatprep.mubr.bf16.mxu0 %v1247
      %2711 = vmatmul.mubr.bf16.gmra.mxu0 %v1246
      %v2712 = vpop.f32.mrf.mxu0
      %v2713 = vadd.f32 %v2592, %v2712
      %v2714 = vpop.f32.mrf.mxu0
      %v2715 = vpop.f32.mrf.mxu0
      %v2716 = vadd.f32 %v2595, %v2715
      %v2717 = vpop.f32.mrf.mxu0
      %2718 = vmatprep.mubr.bf16.mxu0 %v1264
      %2719 = vmatmul.mubr.bf16.gmra.mxu0 %v1263
      %v2720 = vpop.f32.mrf.mxu0
      %v2721 = vadd.f32 %v2600, %v2720
      %v2722 = vpop.f32.mrf.mxu0
      %v2723 = vpop.f32.mrf.mxu0
      %v2724 = vadd.f32 %v2603, %v2723
      %v2725 = vpop.f32.mrf.mxu0
      %2726 = vmatprep.mubr.bf16.mxu0 %v1281
      %2727 = vmatmul.mubr.bf16.gmra.mxu0 %v1280
      %v2728 = vpop.f32.mrf.mxu0
      %v2729 = vadd.f32 %v2608, %v2728
      %v2730 = vpop.f32.mrf.mxu0
      %v2731 = vpop.f32.mrf.mxu0
      %v2732 = vadd.f32 %v2611, %v2731
      %v2733 = vpop.f32.mrf.mxu0
      %2734 = vmatprep.mubr.bf16.mxu0 %v1298
      %2735 = vmatmul.mubr.bf16.gmra.mxu0 %v1297
      %v2736 = vpop.f32.mrf.mxu0
      %v2737 = vadd.f32 %v2616, %v2736
      %v2738 = vpop.f32.mrf.mxu0
      %v2739 = vpop.f32.mrf.mxu0
      %v2740 = vadd.f32 %v2619, %v2739
      %v2741 = vpop.f32.mrf.mxu0
      %2742 = vmatprep.mubr.bf16.mxu0 %v1315
      %2743 = vmatmul.mubr.bf16.gmra.mxu0 %v1314
      %v2744 = vpop.f32.mrf.mxu0
      %v2745 = vadd.f32 %v2624, %v2744
      %v2746 = vpop.f32.mrf.mxu0
      %v2747 = vpop.f32.mrf.mxu0
      %v2748 = vadd.f32 %v2627, %v2747
      %v2749 = vpop.f32.mrf.mxu0
      %2750 = vmatprep.mubr.bf16.mxu0 %v1332
      %2751 = vmatmul.mubr.bf16.gmra.mxu0 %v1331
      %v2752 = vpop.f32.mrf.mxu0
      %v2753 = vadd.f32 %v2632, %v2752
      %v2754 = vpop.f32.mrf.mxu0
      %v2755 = vpop.f32.mrf.mxu0
      %v2756 = vadd.f32 %v2635, %v2755
      %v2757 = vpop.f32.mrf.mxu0
      %2758 = vmatprep.mubr.bf16.mxu0 %v1349
      %2759 = vmatmul.mubr.bf16.gmra.mxu0 %v1348
      %v2760 = vpop.f32.mrf.mxu0
      %v2761 = vadd.f32 %v2640, %v2760
      %v2762 = vpop.f32.mrf.mxu0
      %v2763 = vpop.f32.mrf.mxu0
      %v2764 = vadd.f32 %v2643, %v2763
      %v2765 = vpop.f32.mrf.mxu0
      %2766 = vmatprep.mubr.bf16.mxu0 %v1366
      %2767 = vmatmul.mubr.bf16.gmra.mxu0 %v1365
      %v2768 = vpop.f32.mrf.mxu0
      %v2769 = vadd.f32 %v2648, %v2768
      %v2770 = vpop.f32.mrf.mxu0
      %v2771 = vpop.f32.mrf.mxu0
      %v2772 = vadd.f32 %v2651, %v2771
      %v2773 = vpop.f32.mrf.mxu0
      %2774 = vmatprep.mubr.bf16.mxu0 %v1383
      %2775 = vmatmul.mubr.bf16.gmra.mxu0 %v1382
      %v2776 = vpop.f32.mrf.mxu0
      %v2777 = vadd.f32 %v2656, %v2776
      %v2778 = vpop.f32.mrf.mxu0
      %v2779 = vpop.f32.mrf.mxu0
      %v2780 = vadd.f32 %v2659, %v2779
      %v2781 = vpop.f32.mrf.mxu0
      %2782 = vmatprep.mubr.bf16.mxu0 %v1400
      %2783 = vmatmul.mubr.bf16.gmra.mxu0 %v1399
      %v2784 = vpop.f32.mrf.mxu0
      %v2785 = vadd.f32 %v2664, %v2784
      %v2786 = vpop.f32.mrf.mxu0
      %v2787 = vpop.f32.mrf.mxu0
      %v2788 = vadd.f32 %v2667, %v2787
      %v2789 = vpop.f32.mrf.mxu0
      %2790 = vdwg.mxu0
      %2791 = vmatprep.subr.bf16.mxu0 0
      %2792 = vmatpush1.bf16.msra.mxu0 0
      %2793 = vmatprep.subr.bf16.mxu0 0
      %2794 = vmatpush1.bf16.msra.mxu0 0
      %2795 = vmatprep.subr.bf16.mxu0 0
      %2796 = vmatpush1.bf16.msra.mxu0 0
      %2797 = vmatprep.subr.bf16.mxu0 0
      %2798 = vmatpush1.bf16.msra.mxu0 0
      %2799 = vmatprep.subr.bf16.mxu0 0
      %2800 = vmatpush1.bf16.msra.mxu0 0
      %2801 = vmatprep.subr.bf16.mxu0 0
      %2802 = vmatpush1.bf16.msra.mxu0 0
      %2803 = vmatprep.subr.bf16.mxu0 0
      %2804 = vmatpush1.bf16.msra.mxu0 0
      %2805 = vmatprep.subr.bf16.mxu0 0
      %2806 = vmatpush1.bf16.msra.mxu0 %v1788
      %2807 = vmatprep.subr.bf16.mxu0 0
      %2808 = vmatpush2.bf16.msra.mxu0 0
      %2809 = vmatprep.subr.bf16.mxu0 0
      %2810 = vmatpush2.bf16.msra.mxu0 0
      %2811 = vmatprep.subr.bf16.mxu0 0
      %2812 = vmatpush2.bf16.msra.mxu0 0
      %2813 = vmatprep.subr.bf16.mxu0 0
      %2814 = vmatpush2.bf16.msra.mxu0 0
      %2815 = vmatprep.subr.bf16.mxu0 0
      %2816 = vmatpush2.bf16.msra.mxu0 0
      %2817 = vmatprep.subr.bf16.mxu0 0
      %2818 = vmatpush2.bf16.msra.mxu0 0
      %2819 = vmatprep.subr.bf16.mxu0 0
      %2820 = vmatpush2.bf16.msra.mxu0 0
      %2821 = vmatprep.subr.bf16.mxu0 0
      %2822 = vmatpush2.bf16.msra.mxu0 0
      %2823 = vmatprep.mubr.bf16.mxu0 0
      %2824 = vmatmul.mubr.bf16.gmra.mxu0 %v1791
      %v2825 = vpop.f32.mrf.mxu0
      %v2826 = vadd.f32 %v2705, %v2825
      %v2827 = vpop.f32.mrf.mxu0
      %v2828 = vpop.f32.mrf.mxu0
      %v2829 = vadd.f32 %v2708, %v2828
      %v2830 = vpop.f32.mrf.mxu0
      %2831 = vmatprep.mubr.bf16.mxu0 0
      %2832 = vmatmul.mubr.bf16.gmra.mxu0 %v1794
      %v2833 = vpop.f32.mrf.mxu0
      %v2834 = vadd.f32 %v2713, %v2833
      %v2835 = vpop.f32.mrf.mxu0
      %v2836 = vpop.f32.mrf.mxu0
      %v2837 = vadd.f32 %v2716, %v2836
      %v2838 = vpop.f32.mrf.mxu0
      %2839 = vmatprep.mubr.bf16.mxu0 0
      %2840 = vmatmul.mubr.bf16.gmra.mxu0 %v1797
      %v2841 = vpop.f32.mrf.mxu0
      %v2842 = vadd.f32 %v2721, %v2841
      %v2843 = vpop.f32.mrf.mxu0
      %v2844 = vpop.f32.mrf.mxu0
      %v2845 = vadd.f32 %v2724, %v2844
      %v2846 = vpop.f32.mrf.mxu0
      %2847 = vmatprep.mubr.bf16.mxu0 0
      %2848 = vmatmul.mubr.bf16.gmra.mxu0 %v1800
      %v2849 = vpop.f32.mrf.mxu0
      %v2850 = vadd.f32 %v2729, %v2849
      %v2851 = vpop.f32.mrf.mxu0
      %v2852 = vpop.f32.mrf.mxu0
      %v2853 = vadd.f32 %v2732, %v2852
      %v2854 = vpop.f32.mrf.mxu0
      %2855 = vmatprep.mubr.bf16.mxu0 0
      %2856 = vmatmul.mubr.bf16.gmra.mxu0 %v1803
      %v2857 = vpop.f32.mrf.mxu0
      %v2858 = vadd.f32 %v2737, %v2857
      %v2859 = vpop.f32.mrf.mxu0
      %v2860 = vpop.f32.mrf.mxu0
      %v2861 = vadd.f32 %v2740, %v2860
      %v2862 = vpop.f32.mrf.mxu0
      %2863 = vmatprep.mubr.bf16.mxu0 0
      %2864 = vmatmul.mubr.bf16.gmra.mxu0 %v1806
      %v2865 = vpop.f32.mrf.mxu0
      %v2866 = vadd.f32 %v2745, %v2865
      %v2867 = vpop.f32.mrf.mxu0
      %v2868 = vpop.f32.mrf.mxu0
      %v2869 = vadd.f32 %v2748, %v2868
      %v2870 = vpop.f32.mrf.mxu0
      %2871 = vmatprep.mubr.bf16.mxu0 0
      %2872 = vmatmul.mubr.bf16.gmra.mxu0 %v1809
      %v2873 = vpop.f32.mrf.mxu0
      %v2874 = vadd.f32 %v2753, %v2873
      %v2875 = vpop.f32.mrf.mxu0
      %v2876 = vpop.f32.mrf.mxu0
      %v2877 = vadd.f32 %v2756, %v2876
      %v2878 = vpop.f32.mrf.mxu0
      %2879 = vmatprep.mubr.bf16.mxu0 0
      %2880 = vmatmul.mubr.bf16.gmra.mxu0 %v1812
      %v2881 = vpop.f32.mrf.mxu0
      %v2882 = vadd.f32 %v2761, %v2881
      %v2883 = vpop.f32.mrf.mxu0
      %v2884 = vpop.f32.mrf.mxu0
      %v2885 = vadd.f32 %v2764, %v2884
      %v2886 = vpop.f32.mrf.mxu0
      %2887 = vmatprep.mubr.bf16.mxu0 0
      %2888 = vmatmul.mubr.bf16.gmra.mxu0 %v1815
      %v2889 = vpop.f32.mrf.mxu0
      %v2890 = vadd.f32 %v2769, %v2889
      %v2891 = vpop.f32.mrf.mxu0
      %v2892 = vpop.f32.mrf.mxu0
      %v2893 = vadd.f32 %v2772, %v2892
      %v2894 = vpop.f32.mrf.mxu0
      %2895 = vmatprep.mubr.bf16.mxu0 0
      %2896 = vmatmul.mubr.bf16.gmra.mxu0 %v1818
      %v2897 = vpop.f32.mrf.mxu0
      %v2898 = vadd.f32 %v2777, %v2897
      %v2899 = vpop.f32.mrf.mxu0
      %v2900 = vpop.f32.mrf.mxu0
      %v2901 = vadd.f32 %v2780, %v2900
      %v2902 = vpop.f32.mrf.mxu0
      %2903 = vmatprep.mubr.bf16.mxu0 0
      %2904 = vmatmul.mubr.bf16.gmra.mxu0 %v1821
      %v2905 = vpop.f32.mrf.mxu0
      %v2906 = vadd.f32 %v2785, %v2905
      %v2907 = vpop.f32.mrf.mxu0
      %v2908 = vpop.f32.mrf.mxu0
      %v2909 = vadd.f32 %v2788, %v2908
      %v2910 = vpop.f32.mrf.mxu0
      %2911 = vdwg.mxu0
      %vm2912 = vcmask 400384
      %2913 = vst.msk [vmem:[%s175] sm:$0xff] %vm2912, %v2826
      %2914 = vst.msk [vmem:[%s175 + $0x8] sm:$0xff] %vm2912, %v2829
      %2915 = vst.msk [vmem:[%s175 + $0x10] sm:$0xff] %vm2912, %v2834
      %2916 = vst.msk [vmem:[%s175 + $0x18] sm:$0xff] %vm2912, %v2837
      %2917 = vst.msk [vmem:[%s175 + $0x20] sm:$0xff] %vm2912, %v2842
      %2918 = vst.msk [vmem:[%s175 + $0x28] sm:$0xff] %vm2912, %v2845
      %2919 = vst.msk [vmem:[%s175 + $0x30] sm:$0xff] %vm2912, %v2850
      %2920 = vst.msk [vmem:[%s175 + $0x38] sm:$0xff] %vm2912, %v2853
      %2921 = vst.msk [vmem:[%s175 + $0x40] sm:$0xff] %vm2912, %v2858
      %2922 = vst.msk [vmem:[%s175 + $0x48] sm:$0xff] %vm2912, %v2861
      %2923 = vst.msk [vmem:[%s175 + $0x50] sm:$0xff] %vm2912, %v2866
      %2924 = vst.msk [vmem:[%s175 + $0x58] sm:$0xff] %vm2912, %v2869
      %2925 = vst.msk [vmem:[%s175 + $0x60] sm:$0xff] %vm2912, %v2874
      %2926 = vst.msk [vmem:[%s175 + $0x68] sm:$0xff] %vm2912, %v2877
      %2927 = vst.msk [vmem:[%s175 + $0x70] sm:$0xff] %vm2912, %v2882
      %2928 = vst.msk [vmem:[%s175 + $0x78] sm:$0xff] %vm2912, %v2885
      %2929 = vst.msk [vmem:[%s175 + $0x80] sm:$0xff] %vm2912, %v2890
      %2930 = vst.msk [vmem:[%s175 + $0x88] sm:$0xff] %vm2912, %v2893
      %2931 = vst.msk [vmem:[%s175 + $0x90] sm:$0xff] %vm2912, %v2898
      %2932 = vst.msk [vmem:[%s175 + $0x98] sm:$0xff] %vm2912, %v2901
      %2933 = vst.msk [vmem:[%s175 + $0xa0] sm:$0xff] %vm2912, %v2906
      %2934 = vst.msk [vmem:[%s175 + $0xa8] sm:$0xff] %vm2912, %v2909
      %s2935 = smul.u32 22, %s14
      %p2936 = scmp.lt.s32.totalorder %s2935, 43
      %s2937 = scalar_select %p2936, %s2935, 43
      %s2938 = smul.addr %s2937, 8
      %s2939 = scalar_lea.vmem %s3, %s2938
      // Predicated region
      $region33: #{tpu_custom_call.1} parent=31 // pred_check
        %p2940 = pneg %p100
      $region34: #{tpu_custom_call.1} parent=31 // pred_check_branch
        %2942 = sbr.rel (%p2940) target = $region36
      $region35: #{tpu_custom_call.1} parent=31 // pred_region
        %s2943 = smul.u32 22, %s14
      $region36: #{tpu_custom_call.1} parent=31 // pred_fallthru
        _
    $region32: #{tpu_custom_call.1} parent=5 // pred_fallthru
      _
    %p2944 = scmp.le.s32.totalorder 2, %s9
    // Predicated region
    $region37: #{tpu_custom_call.1} parent=5 // pred_check
      %p2945 = pneg %p2944
    $region38: #{tpu_custom_call.1} parent=5 // pred_check_branch
      %2947 = sbr.rel (%p2945) target = $region40
    $region39: #{tpu_custom_call.1} parent=5 // pred_region
      %s2948 = ssub.s32 %s9, 2
      // Predicated region
      $region41: #{tpu_custom_call.1} parent=39 // pred_check
        %p2949 = pneg %p106
      $region42: #{tpu_custom_call.1} parent=39 // pred_check_branch
        %2951 = sbr.rel (%p2949) target = $region44
      $region43: #{tpu_custom_call.1} parent=39 // pred_region
        %s2952 = smul.u32 22, %s15
        %p2953 = scmp.lt.s32.totalorder %s2952, 43
        %s2954 = scalar_select %p2953, %s2952, 43
        %s2955 = smul.addr %s2954, 8
        %s2956 = scalar_lea.vmem %s3, %s2955
      $region44: #{tpu_custom_call.1} parent=39 // pred_fallthru
        _
    $region40: #{tpu_custom_call.1} parent=5 // pred_fallthru
      _
  $region6: #{tpu_custom_call.1} parent=0 // loop_footer
    %s13 = sadd.s32 1, %s9
  $region7: #{tpu_custom_call.1} parent=0 // loop_footer_branch
    %8 = sbr.rel target = $region3
  $region8: #{tpu_custom_call.1} parent=0 // loop_exit
    _

</llo_original>
